<compile_context>
chip_gen: v5e
topology: v5e:2x2
jax: 0.10.0
libtpu: 0.0.40
codegen_flags: <defaults>
</compile_context>

<pallas_src>
import jax
import jax.numpy as jnp
from jax import lax
from jax.experimental import pallas as pl
from jax.experimental.pallas import tpu as pltpu


def _round_up(n: int, m: int) -> int:
    return ((n + m - 1) // m) * m


def _nbytes(a) -> int:
    n = 1
    for s in a.shape:
        n *= int(s)
    return n * jnp.dtype(a.dtype).itemsize


def ncf_kernel(uid_ref, mid_ref,          # (1, TB) int32 (movie ids pre-offset)
               emb_ref,                   # (2D, NK) bf16, block-diag combined table
               w1_ref, b1_ref,            # (128, 2D) bf16, (128, 1) f32
               w2_ref, b2_ref,            # (64, 128) bf16, (64, 1) f32
               w3_ref, b3_ref,            # (64, 1) f32,   (1, 1) f32
               o_ref):                    # (1, TB) f32, lane-dense
    """One batch tile of NCF, fully transposed (batch on the lane axis):
        gather -> Linear(64,128)+ReLU -> Linear(128,64)+ReLU -> Linear(64,1)
        -> sigmoid -> *4 + 1
    """
    nk = emb_ref.shape[1]
    tb = uid_ref.shape[1]

    uid = uid_ref[...]                    # (1, TB) int32
    mid = mid_ref[...]                    # (1, TB) int32, already offset by NU_pad

    # Embedding gather as a one-hot bf16 matmul on the MXU. Each column of the
    # one-hot has exactly two ones (user row, movie row of the combined table),
    # so  emb @ onehot == concat(user_emb, movie_emb)^T  directly (2D, TB).
    k_iota = lax.broadcasted_iota(jnp.int32, (nk, tb), 0)
    sel = (k_iota == uid) | (k_iota == mid)
    onehot = jnp.where(sel, 1.0, 0.0).astype(jnp.bfloat16)          # (NK, TB)
    x_t = jnp.dot(emb_ref[...], onehot,
                  preferred_element_type=jnp.float32).astype(jnp.bfloat16)

    # Layer 1: single K=2D MXU push, f32 accumulate, bias + ReLU on the VPU.
    h1 = jnp.dot(w1_ref[...], x_t,
                 preferred_element_type=jnp.float32) + b1_ref[...]  # (128, TB)
    h1 = jnp.maximum(h1, 0.0).astype(jnp.bfloat16)

    # Layer 2.
    h2 = jnp.dot(w2_ref[...], h1,
                 preferred_element_type=jnp.float32) + b2_ref[...]  # (64, TB)
    h2 = jnp.maximum(h2, 0.0)                                       # f32

    # Layer 3 (64 -> 1): VPU multiply + sublane reduce -> lane-dense (1, TB).
    h3 = jnp.sum(h2 * w3_ref[...], axis=0, keepdims=True) + b3_ref[...]

    # Sigmoid (EUP) + rescale, stored as an unmasked lane-dense row.
    o_ref[...] = jax.nn.sigmoid(h3) * 4.0 + 1.0


def prepare_params(params):
    """One-time conversion of torch-layout NCF params into the kernel layout."""
    user_tbl, movie_tbl, w1, b1, w2, b2, w3, b3 = params
    nu, d = user_tbl.shape
    nm = movie_tbl.shape[0]
    nu_pad = _round_up(nu, 128)
    nm_pad = _round_up(nm, 128)

    # Block-diagonal combined table: columns [0, nu_pad) hold user rows in the
    # top D features, columns [nu_pad, nu_pad+nm_pad) hold movie rows in the
    # bottom D features; padded columns are zero (never selected).
    emb = jnp.zeros((2 * d, nu_pad + nm_pad), jnp.float32)
    emb = emb.at[:d, :nu].set(user_tbl.T)
    emb = emb.at[d:, nu_pad:nu_pad + nm].set(movie_tbl.T)

    return dict(
        emb=emb.astype(jnp.bfloat16),                  # (2D, NK)
        w1=w1.astype(jnp.bfloat16),                    # (128, 2D)
        b1=b1.reshape(-1, 1).astype(jnp.float32),      # (128, 1)
        w2=w2.astype(jnp.bfloat16),                    # (64, 128)
        b2=b2.reshape(-1, 1).astype(jnp.float32),      # (64, 1)
        w3=w3.reshape(-1, 1).astype(jnp.float32),      # (64, 1)
        b3=b3.reshape(1, 1).astype(jnp.float32),       # (1, 1)
        nu_pad=nu_pad,
    )


def ncf_forward(user_ids, movie_ids, kp, *, block_rows=4096):
    """ids (B,) int -> ratings (B,) f32 in [1, 5]."""
    B = int(user_ids.shape[0])
    nu_pad = kp["nu_pad"]

    # Batch tile size: multiple of 128 (lane axis), as large as block_rows
    # allows; force >= 2 tiles when possible so v7x's two TensorCores both work.
    TB = min(_round_up(block_rows, 128), _round_up(B, 128))
    if B > 128 and _round_up(B, TB) // TB < 2:
        TB = _round_up(pl.cdiv(B, 2), 128)
    B_pad = _round_up(B, TB)
    num_tiles = B_pad // TB

    uid = user_ids.astype(jnp.int32)
    mid = movie_ids.astype(jnp.int32) + nu_pad        # offset into combined table
    if B_pad != B:
        # Padded rows use id 0 (a valid table column) -> no OOB-selects possible.
        uid = jnp.pad(uid, (0, B_pad - B))
        mid = jnp.pad(mid, (0, B_pad - B))
    uid2d = uid.reshape(1, B_pad)
    mid2d = mid.reshape(1, B_pad)

    id_spec = pl.BlockSpec((1, TB), lambda i: (0, i))

    def resident(arr):
        # Constant block index: fetched once, stays VMEM-resident across tiles.
        return pl.BlockSpec(arr.shape, lambda i: (0, 0))

    weights = (kp["emb"], kp["w1"], kp["b1"], kp["w2"], kp["b2"],
               kp["w3"], kp["b3"])

    d2, nk = kp["emb"].shape
    h1 = kp["w1"].shape[0]
    h2 = kp["w2"].shape[0]
    flops = 2 * B_pad * (d2 * nk + d2 * h1 + h1 * h2 + h2)
    bytes_accessed = 3 * B_pad * 4 + sum(_nbytes(a) for a in weights)
    cost = pl.CostEstimate(flops=flops, transcendentals=B_pad,
                           bytes_accessed=bytes_accessed)

    out = pl.pallas_call(
        ncf_kernel,
        out_shape=jax.ShapeDtypeStruct((1, B_pad), jnp.float32),
        grid=(num_tiles,),
        in_specs=[id_spec, id_spec] + [resident(a) for a in weights],
        out_specs=pl.BlockSpec((1, TB), lambda i: (0, i)),
        compiler_params=pltpu.CompilerParams(
            dimension_semantics=("parallel",),          # batch tiles independent
            vmem_limit_bytes=32 * 1024 * 1024,          # safe on v5e/v6e/v7x
        ),
        cost_estimate=cost,
    )(uid2d, mid2d, *weights)

    # torch .squeeze(): drop padded rows and the leading axis.
    return out[0, :B]


def init_params(key, num_users, num_movies, embed_dim):
    """Deterministic synthetic parameters in torch (out, in) layout."""
    ks = jax.random.split(key, 8)

    def uni(k, shape, fan_in):
        bound = 1.0 / jnp.sqrt(fan_in)
        return jax.random.uniform(k, shape, jnp.float32, -bound, bound)

    user_tbl = jax.random.normal(ks[0], (num_users, embed_dim), jnp.float32)
    movie_tbl = jax.random.normal(ks[1], (num_movies, embed_dim), jnp.float32)

    in1 = embed_dim * 2
    w1 = uni(ks[2], (128, in1), in1)
    b1 = uni(ks[3], (128,), in1)
    w2 = uni(ks[4], (64, 128), 128)
    b2 = uni(ks[5], (64,), 128)
    w3 = uni(ks[6], (1, 64), 64)
    b3 = uni(ks[7], (1,), 64)
    return (user_tbl, movie_tbl, w1, b1, w2, b2, w3, b3)


if __name__ == "__main__":
    num_users, num_movies, embed_dim = 100, 50, 32
    batch = 500                       # -> 2 tiles of 256 rows + padding

    key = jax.random.PRNGKey(0)
    pkey, ukey, mkey = jax.random.split(key, 3)
    params = init_params(pkey, num_users, num_movies, embed_dim)
    kparams = prepare_params(params)   # one-time cast / repack for the kernel

    user_ids = jax.random.randint(ukey, (batch,), 0, num_users, dtype=jnp.int32)
    movie_ids = jax.random.randint(mkey, (batch,), 0, num_movies, dtype=jnp.int32)

    out = ncf_forward(user_ids, movie_ids, kparams)
    jax.block_until_ready(out)

    # Pure-JAX f32 reference of the torch forward (kernel uses bf16 MXU operands
    # with f32 accumulation, hence the loosened tolerance).
    user_tbl, movie_tbl, w1, b1, w2, b2, w3, b3 = params
    x = jnp.concatenate([user_tbl[user_ids], movie_tbl[movie_ids]], axis=-1)
    h = jnp.maximum(x @ w1.T + b1, 0.0)
    h = jnp.maximum(h @ w2.T + b2, 0.0)
    ref = (jax.nn.sigmoid(h @ w3.T + b3) * 4.0 + 1.0).reshape(batch)

    assert out.shape == (batch,)
    max_err = float(jnp.max(jnp.abs(out - ref)))
    assert jnp.allclose(out, ref, atol=5e-2, rtol=1e-3), max_err

    print("KERNEL_OK")
</pallas_src>

<mosaic_0001>
module attributes {stable_mosaic.version = 11 : i64} {
  func.func @ncf_kernel(%arg0: i32, %arg1: memref<1x256xi32, #tpu.memory_space<vmem>>, %arg2: memref<1x256xi32, #tpu.memory_space<vmem>>, %arg3: memref<64x256xbf16, #tpu.memory_space<vmem>>, %arg4: memref<128x64xbf16, #tpu.memory_space<vmem>>, %arg5: memref<128x1xf32, #tpu.memory_space<vmem>>, %arg6: memref<64x128xbf16, #tpu.memory_space<vmem>>, %arg7: memref<64x1xf32, #tpu.memory_space<vmem>>, %arg8: memref<64x1xf32, #tpu.memory_space<vmem>>, %arg9: memref<1x1xf32, #tpu.memory_space<vmem>>, %arg10: memref<1x256xf32, #tpu.memory_space<vmem>>) attributes {dimension_semantics = [#tpu.dimension_semantics<parallel>], iteration_bounds = array<i64: 2>, scalar_prefetch = 0 : i64, scratch_operands = 0 : i64, tpu.core_type = #tpu.core_type<tc>, window_params = [{transform_indices = @transform_0, window_bounds = array<i64: 1, 256>}, {transform_indices = @transform_1, window_bounds = array<i64: 1, 256>}, {pipeline_mode = #tpu.pipeline_mode<synchronous>, transform_indices = @transform_2, window_bounds = array<i64: 64, 256>}, {pipeline_mode = #tpu.pipeline_mode<synchronous>, transform_indices = @transform_3, window_bounds = array<i64: 128, 64>}, {pipeline_mode = #tpu.pipeline_mode<synchronous>, transform_indices = @transform_4, window_bounds = array<i64: 128, 1>}, {pipeline_mode = #tpu.pipeline_mode<synchronous>, transform_indices = @transform_5, window_bounds = array<i64: 64, 128>}, {pipeline_mode = #tpu.pipeline_mode<synchronous>, transform_indices = @transform_6, window_bounds = array<i64: 64, 1>}, {pipeline_mode = #tpu.pipeline_mode<synchronous>, transform_indices = @transform_7, window_bounds = array<i64: 64, 1>}, {pipeline_mode = #tpu.pipeline_mode<synchronous>, transform_indices = @transform_8, window_bounds = array<i64: 1, 1>}, {transform_indices = @transform_9, window_bounds = array<i64: 1, 256>}]} {
    %c0 = arith.constant 0 : index
    %c0_0 = arith.constant 0 : index
    %0 = vector.load %arg1[%c0, %c0_0] : memref<1x256xi32, #tpu.memory_space<vmem>>, vector<1x256xi32>
    %c0_1 = arith.constant 0 : index
    %c0_2 = arith.constant 0 : index
    %1 = vector.load %arg2[%c0_1, %c0_2] : memref<1x256xi32, #tpu.memory_space<vmem>>, vector<1x256xi32>
    %2 = tpu.iota {dimensions = array<i32: 0>} : vector<256x256xi32>
    %3 = vector.broadcast %0 : vector<1x256xi32> to vector<256x256xi32>
    %4 = arith.cmpi eq, %2, %3 : vector<256x256xi32>
    %5 = vector.broadcast %1 : vector<1x256xi32> to vector<256x256xi32>
    %6 = arith.cmpi eq, %2, %5 : vector<256x256xi32>
    %7 = arith.ori %4, %6 : vector<256x256xi1>
    %cst = arith.constant 1.000000e+00 : f32
    %cst_3 = arith.constant 0.000000e+00 : f32
    %8 = vector.broadcast %cst : f32 to vector<256x256xf32>
    %9 = vector.broadcast %cst_3 : f32 to vector<256x256xf32>
    %10 = arith.select %7, %8, %9 : vector<256x256xi1>, vector<256x256xf32>
    %11 = arith.truncf %10 : vector<256x256xf32> to vector<256x256xbf16>
    %c0_4 = arith.constant 0 : index
    %c0_5 = arith.constant 0 : index
    %12 = vector.load %arg3[%c0_4, %c0_5] : memref<64x256xbf16, #tpu.memory_space<vmem>>, vector<64x256xbf16>
    %cst_6 = arith.constant dense<0.000000e+00> : vector<64x256xf32>
    %13 = tpu.matmul %12, %11, %cst_6 {dimension_numbers = #tpu.dot_dimension_numbers<[1], [0], [0], [1], [0, 0, 1, 1], [], []>} : vector<64x256xbf16>, vector<256x256xbf16>, vector<64x256xf32> -> vector<64x256xf32>
    %14 = arith.truncf %13 : vector<64x256xf32> to vector<64x256xbf16>
    %c0_7 = arith.constant 0 : index
    %c0_8 = arith.constant 0 : index
    %15 = vector.load %arg4[%c0_7, %c0_8] : memref<128x64xbf16, #tpu.memory_space<vmem>>, vector<128x64xbf16>
    %cst_9 = arith.constant dense<0.000000e+00> : vector<128x256xf32>
    %16 = tpu.matmul %15, %14, %cst_9 {dimension_numbers = #tpu.dot_dimension_numbers<[1], [0], [0], [1], [0, 0, 1, 1], [], []>} : vector<128x64xbf16>, vector<64x256xbf16>, vector<128x256xf32> -> vector<128x256xf32>
    %c0_10 = arith.constant 0 : index
    %c0_11 = arith.constant 0 : index
    %17 = vector.load %arg5[%c0_10, %c0_11] : memref<128x1xf32, #tpu.memory_space<vmem>>, vector<128x1xf32>
    %18 = vector.broadcast %17 : vector<128x1xf32> to vector<128x256xf32>
    %19 = arith.addf %16, %18 : vector<128x256xf32>
    %cst_12 = arith.constant 0.000000e+00 : f32
    %20 = vector.broadcast %cst_12 : f32 to vector<128x256xf32>
    %21 = arith.maximumf %19, %20 : vector<128x256xf32>
    %22 = arith.truncf %21 : vector<128x256xf32> to vector<128x256xbf16>
    %c0_13 = arith.constant 0 : index
    %c0_14 = arith.constant 0 : index
    %23 = vector.load %arg6[%c0_13, %c0_14] : memref<64x128xbf16, #tpu.memory_space<vmem>>, vector<64x128xbf16>
    %cst_15 = arith.constant dense<0.000000e+00> : vector<64x256xf32>
    %24 = tpu.matmul %23, %22, %cst_15 {dimension_numbers = #tpu.dot_dimension_numbers<[1], [0], [0], [1], [0, 0, 1, 1], [], []>} : vector<64x128xbf16>, vector<128x256xbf16>, vector<64x256xf32> -> vector<64x256xf32>
    %c0_16 = arith.constant 0 : index
    %c0_17 = arith.constant 0 : index
    %25 = vector.load %arg7[%c0_16, %c0_17] : memref<64x1xf32, #tpu.memory_space<vmem>>, vector<64x1xf32>
    %26 = vector.broadcast %25 : vector<64x1xf32> to vector<64x256xf32>
    %27 = arith.addf %24, %26 : vector<64x256xf32>
    %cst_18 = arith.constant 0.000000e+00 : f32
    %28 = vector.broadcast %cst_18 : f32 to vector<64x256xf32>
    %29 = arith.maximumf %27, %28 : vector<64x256xf32>
    %c0_19 = arith.constant 0 : index
    %c0_20 = arith.constant 0 : index
    %30 = vector.load %arg8[%c0_19, %c0_20] : memref<64x1xf32, #tpu.memory_space<vmem>>, vector<64x1xf32>
    %31 = vector.broadcast %30 : vector<64x1xf32> to vector<64x256xf32>
    %32 = arith.mulf %29, %31 : vector<64x256xf32>
    %cst_21 = arith.constant dense<0.000000e+00> : vector<256xf32>
    %33 = vector.multi_reduction <add>, %32, %cst_21 [0] : vector<64x256xf32> to vector<256xf32>
    %34 = vector.shape_cast %33 : vector<256xf32> to vector<1x256xf32>
    %c0_22 = arith.constant 0 : index
    %c0_23 = arith.constant 0 : index
    %35 = vector.load %arg9[%c0_22, %c0_23] : memref<1x1xf32, #tpu.memory_space<vmem>>, vector<1x1xf32>
    %36 = vector.broadcast %35 : vector<1x1xf32> to vector<1x256xf32>
    %37 = arith.addf %34, %36 : vector<1x256xf32>
    %38 = arith.negf %37 : vector<1x256xf32>
    %39 = math.exp %38 : vector<1x256xf32>
    %cst_24 = arith.constant 1.000000e+00 : f32
    %40 = vector.broadcast %cst_24 : f32 to vector<1x256xf32>
    %41 = arith.addf %40, %39 : vector<1x256xf32>
    %42 = arith.divf %40, %41 : vector<1x256xf32>
    %cst_25 = arith.constant 4.000000e+00 : f32
    %43 = vector.broadcast %cst_25 : f32 to vector<1x256xf32>
    %44 = arith.mulf %42, %43 : vector<1x256xf32>
    %cst_26 = arith.constant 1.000000e+00 : f32
    %45 = vector.broadcast %cst_26 : f32 to vector<1x256xf32>
    %46 = arith.addf %44, %45 : vector<1x256xf32>
    %c0_27 = arith.constant 0 : index
    %c0_28 = arith.constant 0 : index
    %47 = vector.load %arg10[%c0_27, %c0_28] : memref<1x256xf32, #tpu.memory_space<vmem>>, vector<1x256xf32>
    tpu.vector_store %arg10[%c0_27, %c0_28], %46 {strides = array<i32>} : memref<1x256xf32, #tpu.memory_space<vmem>>, vector<1x256xf32>,
    return
  }
  func.func @transform_0(%arg0: i32) -> (i32, i32) {
    %c0_i32 = arith.constant 0 : i32
    %c0_i32_0 = arith.constant 0 : i32
    return %c0_i32, %arg0 : i32, i32
  }
  func.func @transform_1(%arg0: i32) -> (i32, i32) {
    %c0_i32 = arith.constant 0 : i32
    %c0_i32_0 = arith.constant 0 : i32
    return %c0_i32, %arg0 : i32, i32
  }
  func.func @transform_2(%arg0: i32) -> (i32, i32) {
    %c0_i32 = arith.constant 0 : i32
    %c0_i32_0 = arith.constant 0 : i32
    %c0_i32_1 = arith.constant 0 : i32
    return %c0_i32, %c0_i32_0 : i32, i32
  }
  func.func @transform_3(%arg0: i32) -> (i32, i32) {
    %c0_i32 = arith.constant 0 : i32
    %c0_i32_0 = arith.constant 0 : i32
    %c0_i32_1 = arith.constant 0 : i32
    return %c0_i32, %c0_i32_0 : i32, i32
  }
  func.func @transform_4(%arg0: i32) -> (i32, i32) {
    %c0_i32 = arith.constant 0 : i32
    %c0_i32_0 = arith.constant 0 : i32
    %c0_i32_1 = arith.constant 0 : i32
    return %c0_i32, %c0_i32_0 : i32, i32
  }
  func.func @transform_5(%arg0: i32) -> (i32, i32) {
    %c0_i32 = arith.constant 0 : i32
    %c0_i32_0 = arith.constant 0 : i32
    %c0_i32_1 = arith.constant 0 : i32
    return %c0_i32, %c0_i32_0 : i32, i32
  }
  func.func @transform_6(%arg0: i32) -> (i32, i32) {
    %c0_i32 = arith.constant 0 : i32
    %c0_i32_0 = arith.constant 0 : i32
    %c0_i32_1 = arith.constant 0 : i32
    return %c0_i32, %c0_i32_0 : i32, i32
  }
  func.func @transform_7(%arg0: i32) -> (i32, i32) {
    %c0_i32 = arith.constant 0 : i32
    %c0_i32_0 = arith.constant 0 : i32
    %c0_i32_1 = arith.constant 0 : i32
    return %c0_i32, %c0_i32_0 : i32, i32
  }
  func.func @transform_8(%arg0: i32) -> (i32, i32) {
    %c0_i32 = arith.constant 0 : i32
    %c0_i32_0 = arith.constant 0 : i32
    %c0_i32_1 = arith.constant 0 : i32
    return %c0_i32, %c0_i32_0 : i32, i32
  }
  func.func @transform_9(%arg0: i32) -> (i32, i32) {
    %c0_i32 = arith.constant 0 : i32
    %c0_i32_0 = arith.constant 0 : i32
    return %c0_i32, %arg0 : i32, i32
  }
}

</mosaic_0001>

<llo_original>
// kernel: tpu_custom_call.1
$region0: #{tpu_custom_call.1}
  #allocation0 [shape = 'u32[]', space=smem, size = 0x4, offset = 0x4, fixed_abs, tag = 'smem constant byte address 0x4 - core index']
  #allocation1 [shape = 'u32[72,128]{1,0:T(1,128)}', space=vmem, size = 0x9000, scoped, tag = 'internal scratch']
  #allocation2 [shape = 'f32[1,1]{1,0:T(1,128)S(1)}', space=vmem, size = 0x200, scoped, tag = 'scoped memory for tpu_custom_call.1']
  %s0 = inlined_call_operand.vmem [shape: s32[1,512], index: 0, kind: input, shape index: {}]
  %s1 = inlined_call_operand.vmem [shape: s32[1,512], index: 1, kind: input, shape index: {}]
  %s2 = inlined_call_operand.vmem [shape: bf16[64,256], index: 2, kind: input, shape index: {}]
  %s3 = inlined_call_operand.vmem [shape: bf16[128,64], index: 3, kind: input, shape index: {}]
  %s4 = inlined_call_operand.vmem [shape: f32[128,1], index: 4, kind: input, shape index: {}]
  %s5 = inlined_call_operand.vmem [shape: bf16[64,128], index: 5, kind: input, shape index: {}]
  %s6 = inlined_call_operand.vmem [shape: f32[64,1], index: 6, kind: input, shape index: {}]
  %s7 = inlined_call_operand.vmem [shape: f32[64,1], index: 7, kind: input, shape index: {}]
  %s8 = inlined_call_operand.<no memory space> [shape: f32[1,1], index: 8, kind: input, shape index: {}]
  %s9 = inlined_call_operand.hbm [shape: f32[1,512], index: 9, kind: output, shape index: {}]
  %s10 = sld [smem:[#allocation0]]
  $region69: #{tpu_custom_call.1} parent=0
    _
  %s12 = ssub.s32 1, %s10
  %s13 = scalar_select 0, %s12, %s10
  %v14 = vstv %s8
  %15 = vst [vmem:[#allocation2] sm:$0x1] %v14
  $region1: #{tpu_custom_call.1} parent=0
    #allocation3 [shape = 'u8[2048]{0}', space=vmem, size = 0x800, scoped, tag = 'output window, operand 0']
    #allocation4 [shape = 's32[2]{0}', space=sflag, size = 0x8, scoped, tag = 'scoped memory for tpu_custom_call.1']
    %16 = vsyncpa [#allocation4], 0
    %s17 = scalar_lea.sflag [#allocation4], 1
    %18 = vsyncpa %s17, 0
    loop: start=0, step=1, limit=4
    $region2: #{tpu_custom_call.1} parent=1 // loop_pre_header
      _
    $region3: #{tpu_custom_call.1} parent=1 // loop_header
      %s20 = sphi 0, %s24
      %p21 = scmp.ge.s32.totalorder %s20, 4
      %s30 = sphi 0, %s32
      %s33 = sphi 0, %s30
      %s34 = sphi 0, %s33
      %s50 = sphi 0, %s34
      %s56 = sphi 0, %s58
      %s59 = sphi 0, %s56
      %s60 = sphi 0, %s59
      %s76 = sphi 0, %s60
      %s80 = sphi 0, %s80
      %s82 = sphi 0, %s80
      %s83 = sphi 0, %s82
      %s97 = sphi 0, %s83
      %s101 = sphi 0, %s101
      %s103 = sphi 0, %s101
      %s104 = sphi 0, %s103
      %s118 = sphi 0, %s104
      %s122 = sphi 0, %s122
      %s124 = sphi 0, %s122
      %s125 = sphi 0, %s124
      %s139 = sphi 0, %s125
      %s143 = sphi 0, %s143
      %s145 = sphi 0, %s143
      %s146 = sphi 0, %s145
      %s160 = sphi 0, %s146
      %s164 = sphi 0, %s164
      %s166 = sphi 0, %s164
      %s167 = sphi 0, %s166
      %s181 = sphi 0, %s167
      %s185 = sphi 0, %s185
      %s187 = sphi 0, %s185
      %s188 = sphi 0, %s187
      %s202 = sphi 0, %s188
      %s206 = sphi 0, %s206
      %s208 = sphi 0, %s206
      %s209 = sphi 0, %s208
      %s223 = sphi 0, %s209
      %s229 = sphi 0, %s231
      %s232 = sphi 0, %s229
      %s233 = sphi 0, %s232
      %s249 = sphi 0, %s233
    $region4: #{tpu_custom_call.1} parent=1 // loop_header_branch
      %23 = sbr.rel (%p21) target = $region8
    $region5: #{tpu_custom_call.1} parent=1 // loop_body
      %s25 = ssub.s32 %s20, 1
      %s26 = ssub.s32 %s20, 2
      %s27 = sadd.s32 %s20, 1
      %s28 = ssub.s32 %s20, %s27
      %p29 = scmp.eq.s32.totalorder %s28, 0
      %s31 = sadd.s32 %s30, 1
      %s32 = scalar_select %p29, %s30, %s31
      %p35 = pneg %p29
      %p36 = scmp.eq.s32.totalorder %s20, 1
      %p37 = por %p35, %p36
      %p38 = scmp.ne.s32.totalorder %s30, %s33
      %p39 = scmp.eq.s32.totalorder %s20, 0
      %p40 = por %p38, %p39
      %p41 = scmp.ne.s32.totalorder %s30, %s33
      %p42 = scmp.eq.s32.totalorder %s25, 1
      %p43 = por %p41, %p42
      %p44 = scmp.ne.s32.totalorder %s33, %s34
      %p45 = scmp.eq.s32.totalorder %s25, 0
      %p46 = por %p44, %p45
      %p47 = scmp.ne.s32.totalorder %s33, %s34
      %p48 = scmp.eq.s32.totalorder %s26, 1
      %p49 = por %p47, %p48
      %p51 = scmp.ne.s32.totalorder %s34, %s50
      %p52 = scmp.eq.s32.totalorder %s26, 0
      %p53 = por %p51, %p52
      %s54 = ssub.s32 %s20, %s27
      %p55 = scmp.eq.s32.totalorder %s54, 0
      %s57 = sadd.s32 %s56, 1
      %s58 = scalar_select %p55, %s56, %s57
      %p61 = pneg %p55
      %p62 = scmp.eq.s32.totalorder %s20, 1
      %p63 = por %p61, %p62
      %p64 = scmp.ne.s32.totalorder %s56, %s59
      %p65 = scmp.eq.s32.totalorder %s20, 0
      %p66 = por %p64, %p65
      %p67 = scmp.ne.s32.totalorder %s56, %s59
      %p68 = scmp.eq.s32.totalorder %s25, 1
      %p69 = por %p67, %p68
      %p70 = scmp.ne.s32.totalorder %s59, %s60
      %p71 = scmp.eq.s32.totalorder %s25, 0
      %p72 = por %p70, %p71
      %p73 = scmp.ne.s32.totalorder %s59, %s60
      %p74 = scmp.eq.s32.totalorder %s26, 1
      %p75 = por %p73, %p74
      %p77 = scmp.ne.s32.totalorder %s60, %s76
      %p78 = scmp.eq.s32.totalorder %s26, 0
      %p79 = por %p77, %p78
      %s81 = sadd.s32 %s80, 1
      %p84 = scmp.eq.s32.totalorder %s20, 1
      %p85 = scmp.ne.s32.totalorder %s80, %s82
      %p86 = scmp.eq.s32.totalorder %s20, 0
      %p87 = por %p85, %p86
      %p88 = scmp.ne.s32.totalorder %s80, %s82
      %p89 = scmp.eq.s32.totalorder %s25, 1
      %p90 = por %p88, %p89
      %p91 = scmp.ne.s32.totalorder %s82, %s83
      %p92 = scmp.eq.s32.totalorder %s25, 0
      %p93 = por %p91, %p92
      %p94 = scmp.ne.s32.totalorder %s82, %s83
      %p95 = scmp.eq.s32.totalorder %s26, 1
      %p96 = por %p94, %p95
      %p98 = scmp.ne.s32.totalorder %s83, %s97
      %p99 = scmp.eq.s32.totalorder %s26, 0
      %p100 = por %p98, %p99
      %s102 = sadd.s32 %s101, 1
      %p105 = scmp.eq.s32.totalorder %s20, 1
      %p106 = scmp.ne.s32.totalorder %s101, %s103
      %p107 = scmp.eq.s32.totalorder %s20, 0
      %p108 = por %p106, %p107
      %p109 = scmp.ne.s32.totalorder %s101, %s103
      %p110 = scmp.eq.s32.totalorder %s25, 1
      %p111 = por %p109, %p110
      %p112 = scmp.ne.s32.totalorder %s103, %s104
      %p113 = scmp.eq.s32.totalorder %s25, 0
      %p114 = por %p112, %p113
      %p115 = scmp.ne.s32.totalorder %s103, %s104
      %p116 = scmp.eq.s32.totalorder %s26, 1
      %p117 = por %p115, %p116
      %p119 = scmp.ne.s32.totalorder %s104, %s118
      %p120 = scmp.eq.s32.totalorder %s26, 0
      %p121 = por %p119, %p120
      %s123 = sadd.s32 %s122, 1
      %p126 = scmp.eq.s32.totalorder %s20, 1
      %p127 = scmp.ne.s32.totalorder %s122, %s124
      %p128 = scmp.eq.s32.totalorder %s20, 0
      %p129 = por %p127, %p128
      %p130 = scmp.ne.s32.totalorder %s122, %s124
      %p131 = scmp.eq.s32.totalorder %s25, 1
      %p132 = por %p130, %p131
      %p133 = scmp.ne.s32.totalorder %s124, %s125
      %p134 = scmp.eq.s32.totalorder %s25, 0
      %p135 = por %p133, %p134
      %p136 = scmp.ne.s32.totalorder %s124, %s125
      %p137 = scmp.eq.s32.totalorder %s26, 1
      %p138 = por %p136, %p137
      %p140 = scmp.ne.s32.totalorder %s125, %s139
      %p141 = scmp.eq.s32.totalorder %s26, 0
      %p142 = por %p140, %p141
      %s144 = sadd.s32 %s143, 1
      %p147 = scmp.eq.s32.totalorder %s20, 1
      %p148 = scmp.ne.s32.totalorder %s143, %s145
      %p149 = scmp.eq.s32.totalorder %s20, 0
      %p150 = por %p148, %p149
      %p151 = scmp.ne.s32.totalorder %s143, %s145
      %p152 = scmp.eq.s32.totalorder %s25, 1
      %p153 = por %p151, %p152
      %p154 = scmp.ne.s32.totalorder %s145, %s146
      %p155 = scmp.eq.s32.totalorder %s25, 0
      %p156 = por %p154, %p155
      %p157 = scmp.ne.s32.totalorder %s145, %s146
      %p158 = scmp.eq.s32.totalorder %s26, 1
      %p159 = por %p157, %p158
      %p161 = scmp.ne.s32.totalorder %s146, %s160
      %p162 = scmp.eq.s32.totalorder %s26, 0
      %p163 = por %p161, %p162
      %s165 = sadd.s32 %s164, 1
      %p168 = scmp.eq.s32.totalorder %s20, 1
      %p169 = scmp.ne.s32.totalorder %s164, %s166
      %p170 = scmp.eq.s32.totalorder %s20, 0
      %p171 = por %p169, %p170
      %p172 = scmp.ne.s32.totalorder %s164, %s166
      %p173 = scmp.eq.s32.totalorder %s25, 1
      %p174 = por %p172, %p173
      %p175 = scmp.ne.s32.totalorder %s166, %s167
      %p176 = scmp.eq.s32.totalorder %s25, 0
      %p177 = por %p175, %p176
      %p178 = scmp.ne.s32.totalorder %s166, %s167
      %p179 = scmp.eq.s32.totalorder %s26, 1
      %p180 = por %p178, %p179
      %p182 = scmp.ne.s32.totalorder %s167, %s181
      %p183 = scmp.eq.s32.totalorder %s26, 0
      %p184 = por %p182, %p183
      %s186 = sadd.s32 %s185, 1
      %p189 = scmp.eq.s32.totalorder %s20, 1
      %p190 = scmp.ne.s32.totalorder %s185, %s187
      %p191 = scmp.eq.s32.totalorder %s20, 0
      %p192 = por %p190, %p191
      %p193 = scmp.ne.s32.totalorder %s185, %s187
      %p194 = scmp.eq.s32.totalorder %s25, 1
      %p195 = por %p193, %p194
      %p196 = scmp.ne.s32.totalorder %s187, %s188
      %p197 = scmp.eq.s32.totalorder %s25, 0
      %p198 = por %p196, %p197
      %p199 = scmp.ne.s32.totalorder %s187, %s188
      %p200 = scmp.eq.s32.totalorder %s26, 1
      %p201 = por %p199, %p200
      %p203 = scmp.ne.s32.totalorder %s188, %s202
      %p204 = scmp.eq.s32.totalorder %s26, 0
      %p205 = por %p203, %p204
      %s207 = sadd.s32 %s206, 1
      %p210 = scmp.eq.s32.totalorder %s20, 1
      %p211 = scmp.ne.s32.totalorder %s206, %s208
      %p212 = scmp.eq.s32.totalorder %s20, 0
      %p213 = por %p211, %p212
      %p214 = scmp.ne.s32.totalorder %s206, %s208
      %p215 = scmp.eq.s32.totalorder %s25, 1
      %p216 = por %p214, %p215
      %p217 = scmp.ne.s32.totalorder %s208, %s209
      %p218 = scmp.eq.s32.totalorder %s25, 0
      %p219 = por %p217, %p218
      %p220 = scmp.ne.s32.totalorder %s208, %s209
      %p221 = scmp.eq.s32.totalorder %s26, 1
      %p222 = por %p220, %p221
      %p224 = scmp.ne.s32.totalorder %s209, %s223
      %p225 = scmp.eq.s32.totalorder %s26, 0
      %p226 = por %p224, %p225
      %s227 = ssub.s32 %s20, %s27
      %p228 = scmp.eq.s32.totalorder %s227, 0
      %s230 = sadd.s32 %s229, 1
      %s231 = scalar_select %p228, %s229, %s230
      %p234 = pneg %p228
      %p235 = scmp.eq.s32.totalorder %s20, 1
      %p236 = por %p234, %p235
      %p237 = scmp.ne.s32.totalorder %s229, %s232
      %p238 = scmp.eq.s32.totalorder %s20, 0
      %p239 = por %p237, %p238
      %p240 = scmp.ne.s32.totalorder %s229, %s232
      %p241 = scmp.eq.s32.totalorder %s25, 1
      %p242 = por %p240, %p241
      %p243 = scmp.ne.s32.totalorder %s232, %s233
      %p244 = scmp.eq.s32.totalorder %s25, 0
      %p245 = por %p243, %p244
      %p246 = scmp.ne.s32.totalorder %s232, %s233
      %p247 = scmp.eq.s32.totalorder %s26, 1
      %p248 = por %p246, %p247
      %p250 = scmp.ne.s32.totalorder %s233, %s249
      %p251 = scmp.eq.s32.totalorder %s26, 0
      %p252 = por %p250, %p251
      %p253 = scmp.le.s32.totalorder 1, %s20
      %p254 = scmp.lt.s32.totalorder %s20, 3
      %p255 = pnand %p253, %p254
      %p256 = pneg %p255
      // Predicated region
      $region9: #{tpu_custom_call.1} parent=5 // pred_check
        _
      $region10: #{tpu_custom_call.1} parent=5 // pred_check_branch
        %258 = sbr.rel (%p255) target = $region12
      $region11: #{tpu_custom_call.1} parent=5 // pred_region
        %s259 = ssub.s32 %s20, 1
        // Predicated region
        $region13: #{tpu_custom_call.1} parent=11 // pred_check
          %p260 = pneg %p93
        $region14: #{tpu_custom_call.1} parent=11 // pred_check_branch
          %262 = sbr.rel (%p260) target = $region16
        $region15: #{tpu_custom_call.1} parent=11 // pred_region
          _
        $region16: #{tpu_custom_call.1} parent=11 // pred_fallthru
          _
        // Predicated region
        $region17: #{tpu_custom_call.1} parent=11 // pred_check
          %p263 = pneg %p114
        $region18: #{tpu_custom_call.1} parent=11 // pred_check_branch
          %265 = sbr.rel (%p263) target = $region20
        $region19: #{tpu_custom_call.1} parent=11 // pred_region
          _
        $region20: #{tpu_custom_call.1} parent=11 // pred_fallthru
          _
        // Predicated region
        $region21: #{tpu_custom_call.1} parent=11 // pred_check
          %p266 = pneg %p135
        $region22: #{tpu_custom_call.1} parent=11 // pred_check_branch
          %268 = sbr.rel (%p266) target = $region24
        $region23: #{tpu_custom_call.1} parent=11 // pred_region
          _
        $region24: #{tpu_custom_call.1} parent=11 // pred_fallthru
          _
        // Predicated region
        $region25: #{tpu_custom_call.1} parent=11 // pred_check
          %p269 = pneg %p156
        $region26: #{tpu_custom_call.1} parent=11 // pred_check_branch
          %271 = sbr.rel (%p269) target = $region28
        $region27: #{tpu_custom_call.1} parent=11 // pred_region
          _
        $region28: #{tpu_custom_call.1} parent=11 // pred_fallthru
          _
        // Predicated region
        $region29: #{tpu_custom_call.1} parent=11 // pred_check
          %p272 = pneg %p177
        $region30: #{tpu_custom_call.1} parent=11 // pred_check_branch
          %274 = sbr.rel (%p272) target = $region32
        $region31: #{tpu_custom_call.1} parent=11 // pred_region
          _
        $region32: #{tpu_custom_call.1} parent=11 // pred_fallthru
          _
        // Predicated region
        $region33: #{tpu_custom_call.1} parent=11 // pred_check
          %p275 = pneg %p198
        $region34: #{tpu_custom_call.1} parent=11 // pred_check_branch
          %277 = sbr.rel (%p275) target = $region36
        $region35: #{tpu_custom_call.1} parent=11 // pred_region
          _
        $region36: #{tpu_custom_call.1} parent=11 // pred_fallthru
          _
        // Predicated region
        $region37: #{tpu_custom_call.1} parent=11 // pred_check
          %p278 = pneg %p219
        $region38: #{tpu_custom_call.1} parent=11 // pred_check_branch
          %280 = sbr.rel (%p278) target = $region40
        $region39: #{tpu_custom_call.1} parent=11 // pred_region
          _
        $region40: #{tpu_custom_call.1} parent=11 // pred_fallthru
          _
      $region12: #{tpu_custom_call.1} parent=5 // pred_fallthru
        _
      %p281 = scmp.lt.s32.totalorder %s20, 2
      // Predicated region
      $region41: #{tpu_custom_call.1} parent=5 // pred_check
        %p282 = pneg %p281
      $region42: #{tpu_custom_call.1} parent=5 // pred_check_branch
        %284 = sbr.rel (%p282) target = $region44
      $region43: #{tpu_custom_call.1} parent=5 // pred_region
        // Predicated region
        $region45: #{tpu_custom_call.1} parent=43 // pred_check
          %p285 = pneg %p40
        $region46: #{tpu_custom_call.1} parent=43 // pred_check_branch
          %287 = sbr.rel (%p285) target = $region48
        $region47: #{tpu_custom_call.1} parent=43 // pred_region
          %s288 = smul.u32 2, %s20
          %p289 = scmp.lt.s32.totalorder %s288, 3
          %s290 = scalar_select %p289, %s288, 3
          %s291 = scalar_lea.vmem %s0, %s290
          %s292 = smul.u32 2, %s20
        $region48: #{tpu_custom_call.1} parent=43 // pred_fallthru
          _
        // Predicated region
        $region49: #{tpu_custom_call.1} parent=43 // pred_check
          %p293 = pneg %p66
        $region50: #{tpu_custom_call.1} parent=43 // pred_check_branch
          %295 = sbr.rel (%p293) target = $region52
        $region51: #{tpu_custom_call.1} parent=43 // pred_region
          %s296 = smul.u32 2, %s20
          %p297 = scmp.lt.s32.totalorder %s296, 3
          %s298 = scalar_select %p297, %s296, 3
          %s299 = scalar_lea.vmem %s1, %s298
          %s300 = smul.u32 2, %s20
        $region52: #{tpu_custom_call.1} parent=43 // pred_fallthru
          _
      $region44: #{tpu_custom_call.1} parent=5 // pred_fallthru
        _
      %p301 = scmp.le.s32.totalorder 1, %s20
      %p302 = scmp.lt.s32.totalorder %s20, 3
      %p303 = pnand %p301, %p302
      %p304 = pneg %p303
      // Predicated region
      $region53: #{tpu_custom_call.1} parent=5 // pred_check
        _
      $region54: #{tpu_custom_call.1} parent=5 // pred_check_branch
        %306 = sbr.rel (%p303) target = $region56
      $region55: #{tpu_custom_call.1} parent=5 // pred_region
        %s307 = ssub.s32 %s20, 1
        %s308 = smul.u32 2, %s25
        %p309 = scmp.lt.s32.totalorder %s308, 3
        %s310 = scalar_select %p309, %s308, 3
        %s311 = scalar_lea.vmem %s0, %s310
        %p312 = pneg %p46
        %p313 = pneg %p43
        %s314 = smul.u32 2, %s25
        %p315 = scmp.lt.s32.totalorder %s314, 3
        %s316 = scalar_select %p315, %s314, 3
        %s317 = scalar_lea.vmem %s1, %s316
        %p318 = pneg %p72
        %p319 = pneg %p69
        %p320 = pneg %p93
        %p321 = pneg %p90
        %p322 = pneg %p114
        %p323 = pneg %p111
        %p324 = pneg %p135
        %p325 = pneg %p132
        %p326 = pneg %p156
        %p327 = pneg %p153
        %p328 = pneg %p177
        %p329 = pneg %p174
        %p330 = pneg %p198
        %p331 = pneg %p195
        %p332 = pneg %p219
        %p333 = pneg %p216
        %p334 = pneg %p245
        %p335 = pneg %p242
        %s336 = sand.u32 %s232, 1
        %s337 = scalar_lea.sflag [#allocation4], %s336
        %s338 = sand.u32 %s232, 1
        %s339 = smul.addr %s338, 2
        %s340 = scalar_lea.vmem [#allocation3], %s339
        %s341 = smul.u32 2, %s25
        %p342 = scmp.lt.s32.totalorder %s341, 3
        %s343 = scalar_select %p342, %s341, 3
        %s344 = scalar_lea.vmem %s0, %s343
        %s345 = smul.u32 2, %s25
        %s346 = smul.u32 2, %s25
        %p347 = scmp.lt.s32.totalorder %s346, 3
        %s348 = scalar_select %p347, %s346, 3
        %s349 = scalar_lea.vmem %s1, %s348
        %s350 = smul.u32 2, %s25
        %s351 = smul.u32 2, %s25
        %v353 = vld [vmem:[%s344] sm:$0x3]
        %v354 = vld [vmem:[%s349] sm:$0x3]
        %v355 = vlaneseq
        %v356 = vshrl.u32 %v355, 7
        %v357 = vadd.s32 %v356, 8
        %v358 = vadd.s32 %v356, 16
        %v359 = vadd.s32 %v356, 24
        %v360 = vadd.s32 %v356, 32
        %v361 = vadd.s32 %v356, 40
        %v362 = vadd.s32 %v356, 48
        %v363 = vadd.s32 %v356, 56
        %v364 = vadd.s32 %v356, 64
        %v365 = vadd.s32 %v356, 72
        %v366 = vadd.s32 %v356, 80
        %v367 = vadd.s32 %v356, 88
        %v368 = vadd.s32 %v356, 96
        %v369 = vadd.s32 %v356, 104
        %v370 = vadd.s32 %v356, 112
        %v371 = vadd.s32 %v356, 120
        %v372 = vadd.s32 %v356, 128
        %v373 = vadd.s32 %v356, 136
        %v374 = vadd.s32 %v356, 144
        %v375 = vadd.s32 %v356, 152
        %v376 = vadd.s32 %v356, 160
        %v377 = vadd.s32 %v356, 168
        %v378 = vadd.s32 %v356, 176
        %v379 = vadd.s32 %v356, 184
        %v380 = vadd.s32 %v356, 192
        %v381 = vadd.s32 %v356, 200
        %v382 = vadd.s32 %v356, 208
        %v383 = vadd.s32 %v356, 216
        %v384 = vadd.s32 %v356, 224
        %v385 = vadd.s32 %v356, 232
        %v386 = vadd.s32 %v356, 240
        %v387 = vadd.s32 %v356, 248
        %v388 = vperm.slane %v353, 0
        %v389 = vperm.slane %v353, 1
        %vm390 = vcmp.eq.s32.totalorder %v356, %v388
        %vm391 = vcmp.eq.s32.totalorder %v356, %v389
        %vm392 = vcmp.eq.s32.totalorder %v357, %v388
        %vm393 = vcmp.eq.s32.totalorder %v357, %v389
        %vm394 = vcmp.eq.s32.totalorder %v358, %v388
        %vm395 = vcmp.eq.s32.totalorder %v358, %v389
        %vm396 = vcmp.eq.s32.totalorder %v359, %v388
        %vm397 = vcmp.eq.s32.totalorder %v359, %v389
        %vm398 = vcmp.eq.s32.totalorder %v360, %v388
        %vm399 = vcmp.eq.s32.totalorder %v360, %v389
        %vm400 = vcmp.eq.s32.totalorder %v361, %v388
        %vm401 = vcmp.eq.s32.totalorder %v361, %v389
        %vm402 = vcmp.eq.s32.totalorder %v362, %v388
        %vm403 = vcmp.eq.s32.totalorder %v362, %v389
        %vm404 = vcmp.eq.s32.totalorder %v363, %v388
        %vm405 = vcmp.eq.s32.totalorder %v363, %v389
        %vm406 = vcmp.eq.s32.totalorder %v364, %v388
        %vm407 = vcmp.eq.s32.totalorder %v364, %v389
        %vm408 = vcmp.eq.s32.totalorder %v365, %v388
        %vm409 = vcmp.eq.s32.totalorder %v365, %v389
        %vm410 = vcmp.eq.s32.totalorder %v366, %v388
        %vm411 = vcmp.eq.s32.totalorder %v366, %v389
        %vm412 = vcmp.eq.s32.totalorder %v367, %v388
        %vm413 = vcmp.eq.s32.totalorder %v367, %v389
        %vm414 = vcmp.eq.s32.totalorder %v368, %v388
        %vm415 = vcmp.eq.s32.totalorder %v368, %v389
        %vm416 = vcmp.eq.s32.totalorder %v369, %v388
        %vm417 = vcmp.eq.s32.totalorder %v369, %v389
        %vm418 = vcmp.eq.s32.totalorder %v370, %v388
        %vm419 = vcmp.eq.s32.totalorder %v370, %v389
        %vm420 = vcmp.eq.s32.totalorder %v371, %v388
        %vm421 = vcmp.eq.s32.totalorder %v371, %v389
        %vm422 = vcmp.eq.s32.totalorder %v372, %v388
        %vm423 = vcmp.eq.s32.totalorder %v372, %v389
        %vm424 = vcmp.eq.s32.totalorder %v373, %v388
        %vm425 = vcmp.eq.s32.totalorder %v373, %v389
        %vm426 = vcmp.eq.s32.totalorder %v374, %v388
        %vm427 = vcmp.eq.s32.totalorder %v374, %v389
        %vm428 = vcmp.eq.s32.totalorder %v375, %v388
        %vm429 = vcmp.eq.s32.totalorder %v375, %v389
        %vm430 = vcmp.eq.s32.totalorder %v376, %v388
        %vm431 = vcmp.eq.s32.totalorder %v376, %v389
        %vm432 = vcmp.eq.s32.totalorder %v377, %v388
        %vm433 = vcmp.eq.s32.totalorder %v377, %v389
        %vm434 = vcmp.eq.s32.totalorder %v378, %v388
        %vm435 = vcmp.eq.s32.totalorder %v378, %v389
        %vm436 = vcmp.eq.s32.totalorder %v379, %v388
        %vm437 = vcmp.eq.s32.totalorder %v379, %v389
        %vm438 = vcmp.eq.s32.totalorder %v380, %v388
        %vm439 = vcmp.eq.s32.totalorder %v380, %v389
        %vm440 = vcmp.eq.s32.totalorder %v381, %v388
        %vm441 = vcmp.eq.s32.totalorder %v381, %v389
        %vm442 = vcmp.eq.s32.totalorder %v382, %v388
        %vm443 = vcmp.eq.s32.totalorder %v382, %v389
        %vm444 = vcmp.eq.s32.totalorder %v383, %v388
        %vm445 = vcmp.eq.s32.totalorder %v383, %v389
        %vm446 = vcmp.eq.s32.totalorder %v384, %v388
        %vm447 = vcmp.eq.s32.totalorder %v384, %v389
        %vm448 = vcmp.eq.s32.totalorder %v385, %v388
        %vm449 = vcmp.eq.s32.totalorder %v385, %v389
        %vm450 = vcmp.eq.s32.totalorder %v386, %v388
        %vm451 = vcmp.eq.s32.totalorder %v386, %v389
        %vm452 = vcmp.eq.s32.totalorder %v387, %v388
        %vm453 = vcmp.eq.s32.totalorder %v387, %v389
        %v454 = vperm.slane %v354, 0
        %v455 = vperm.slane %v354, 1
        %vm456 = vcmp.eq.s32.totalorder %v356, %v454
        %vm457 = vcmp.eq.s32.totalorder %v356, %v455
        %vm458 = vcmp.eq.s32.totalorder %v357, %v454
        %vm459 = vcmp.eq.s32.totalorder %v357, %v455
        %vm460 = vcmp.eq.s32.totalorder %v358, %v454
        %vm461 = vcmp.eq.s32.totalorder %v358, %v455
        %vm462 = vcmp.eq.s32.totalorder %v359, %v454
        %vm463 = vcmp.eq.s32.totalorder %v359, %v455
        %vm464 = vcmp.eq.s32.totalorder %v360, %v454
        %vm465 = vcmp.eq.s32.totalorder %v360, %v455
        %vm466 = vcmp.eq.s32.totalorder %v361, %v454
        %vm467 = vcmp.eq.s32.totalorder %v361, %v455
        %vm468 = vcmp.eq.s32.totalorder %v362, %v454
        %vm469 = vcmp.eq.s32.totalorder %v362, %v455
        %vm470 = vcmp.eq.s32.totalorder %v363, %v454
        %vm471 = vcmp.eq.s32.totalorder %v363, %v455
        %vm472 = vcmp.eq.s32.totalorder %v364, %v454
        %vm473 = vcmp.eq.s32.totalorder %v364, %v455
        %vm474 = vcmp.eq.s32.totalorder %v365, %v454
        %vm475 = vcmp.eq.s32.totalorder %v365, %v455
        %vm476 = vcmp.eq.s32.totalorder %v366, %v454
        %vm477 = vcmp.eq.s32.totalorder %v366, %v455
        %vm478 = vcmp.eq.s32.totalorder %v367, %v454
        %vm479 = vcmp.eq.s32.totalorder %v367, %v455
        %vm480 = vcmp.eq.s32.totalorder %v368, %v454
        %vm481 = vcmp.eq.s32.totalorder %v368, %v455
        %vm482 = vcmp.eq.s32.totalorder %v369, %v454
        %vm483 = vcmp.eq.s32.totalorder %v369, %v455
        %vm484 = vcmp.eq.s32.totalorder %v370, %v454
        %vm485 = vcmp.eq.s32.totalorder %v370, %v455
        %vm486 = vcmp.eq.s32.totalorder %v371, %v454
        %vm487 = vcmp.eq.s32.totalorder %v371, %v455
        %vm488 = vcmp.eq.s32.totalorder %v372, %v454
        %vm489 = vcmp.eq.s32.totalorder %v372, %v455
        %vm490 = vcmp.eq.s32.totalorder %v373, %v454
        %vm491 = vcmp.eq.s32.totalorder %v373, %v455
        %vm492 = vcmp.eq.s32.totalorder %v374, %v454
        %vm493 = vcmp.eq.s32.totalorder %v374, %v455
        %vm494 = vcmp.eq.s32.totalorder %v375, %v454
        %vm495 = vcmp.eq.s32.totalorder %v375, %v455
        %vm496 = vcmp.eq.s32.totalorder %v376, %v454
        %vm497 = vcmp.eq.s32.totalorder %v376, %v455
        %vm498 = vcmp.eq.s32.totalorder %v377, %v454
        %vm499 = vcmp.eq.s32.totalorder %v377, %v455
        %vm500 = vcmp.eq.s32.totalorder %v378, %v454
        %vm501 = vcmp.eq.s32.totalorder %v378, %v455
        %vm502 = vcmp.eq.s32.totalorder %v379, %v454
        %vm503 = vcmp.eq.s32.totalorder %v379, %v455
        %vm504 = vcmp.eq.s32.totalorder %v380, %v454
        %vm505 = vcmp.eq.s32.totalorder %v380, %v455
        %vm506 = vcmp.eq.s32.totalorder %v381, %v454
        %vm507 = vcmp.eq.s32.totalorder %v381, %v455
        %vm508 = vcmp.eq.s32.totalorder %v382, %v454
        %vm509 = vcmp.eq.s32.totalorder %v382, %v455
        %vm510 = vcmp.eq.s32.totalorder %v383, %v454
        %vm511 = vcmp.eq.s32.totalorder %v383, %v455
        %vm512 = vcmp.eq.s32.totalorder %v384, %v454
        %vm513 = vcmp.eq.s32.totalorder %v384, %v455
        %vm514 = vcmp.eq.s32.totalorder %v385, %v454
        %vm515 = vcmp.eq.s32.totalorder %v385, %v455
        %vm516 = vcmp.eq.s32.totalorder %v386, %v454
        %vm517 = vcmp.eq.s32.totalorder %v386, %v455
        %vm518 = vcmp.eq.s32.totalorder %v387, %v454
        %vm519 = vcmp.eq.s32.totalorder %v387, %v455
        %vm520 = vmor %vm390, %vm456
        %vm521 = vmor %vm391, %vm457
        %vm522 = vmor %vm392, %vm458
        %vm523 = vmor %vm393, %vm459
        %vm524 = vmor %vm394, %vm460
        %vm525 = vmor %vm395, %vm461
        %vm526 = vmor %vm396, %vm462
        %vm527 = vmor %vm397, %vm463
        %vm528 = vmor %vm398, %vm464
        %vm529 = vmor %vm399, %vm465
        %vm530 = vmor %vm400, %vm466
        %vm531 = vmor %vm401, %vm467
        %vm532 = vmor %vm402, %vm468
        %vm533 = vmor %vm403, %vm469
        %vm534 = vmor %vm404, %vm470
        %vm535 = vmor %vm405, %vm471
        %vm536 = vmor %vm406, %vm472
        %vm537 = vmor %vm407, %vm473
        %vm538 = vmor %vm408, %vm474
        %vm539 = vmor %vm409, %vm475
        %vm540 = vmor %vm410, %vm476
        %vm541 = vmor %vm411, %vm477
        %vm542 = vmor %vm412, %vm478
        %vm543 = vmor %vm413, %vm479
        %vm544 = vmor %vm414, %vm480
        %vm545 = vmor %vm415, %vm481
        %vm546 = vmor %vm416, %vm482
        %vm547 = vmor %vm417, %vm483
        %vm548 = vmor %vm418, %vm484
        %vm549 = vmor %vm419, %vm485
        %vm550 = vmor %vm420, %vm486
        %vm551 = vmor %vm421, %vm487
        %vm552 = vmor %vm422, %vm488
        %vm553 = vmor %vm423, %vm489
        %vm554 = vmor %vm424, %vm490
        %vm555 = vmor %vm425, %vm491
        %vm556 = vmor %vm426, %vm492
        %vm557 = vmor %vm427, %vm493
        %vm558 = vmor %vm428, %vm494
        %vm559 = vmor %vm429, %vm495
        %vm560 = vmor %vm430, %vm496
        %vm561 = vmor %vm431, %vm497
        %vm562 = vmor %vm432, %vm498
        %vm563 = vmor %vm433, %vm499
        %vm564 = vmor %vm434, %vm500
        %vm565 = vmor %vm435, %vm501
        %vm566 = vmor %vm436, %vm502
        %vm567 = vmor %vm437, %vm503
        %vm568 = vmor %vm438, %vm504
        %vm569 = vmor %vm439, %vm505
        %vm570 = vmor %vm440, %vm506
        %vm571 = vmor %vm441, %vm507
        %vm572 = vmor %vm442, %vm508
        %vm573 = vmor %vm443, %vm509
        %vm574 = vmor %vm444, %vm510
        %vm575 = vmor %vm445, %vm511
        %vm576 = vmor %vm446, %vm512
        %vm577 = vmor %vm447, %vm513
        %vm578 = vmor %vm448, %vm514
        %vm579 = vmor %vm449, %vm515
        %vm580 = vmor %vm450, %vm516
        %vm581 = vmor %vm451, %vm517
        %vm582 = vmor %vm452, %vm518
        %vm583 = vmor %vm453, %vm519
        %v584 = vsel %vm520, 1.0, 0.0
        %v585 = vsel %vm521, 1.0, 0.0
        %v586 = vsel %vm522, 1.0, 0.0
        %v587 = vsel %vm523, 1.0, 0.0
        %v588 = vsel %vm524, 1.0, 0.0
        %v589 = vsel %vm525, 1.0, 0.0
        %v590 = vsel %vm526, 1.0, 0.0
        %v591 = vsel %vm527, 1.0, 0.0
        %v592 = vsel %vm528, 1.0, 0.0
        %v593 = vsel %vm529, 1.0, 0.0
        %v594 = vsel %vm530, 1.0, 0.0
        %v595 = vsel %vm531, 1.0, 0.0
        %v596 = vsel %vm532, 1.0, 0.0
        %v597 = vsel %vm533, 1.0, 0.0
        %v598 = vsel %vm534, 1.0, 0.0
        %v599 = vsel %vm535, 1.0, 0.0
        %v600 = vsel %vm536, 1.0, 0.0
        %v601 = vsel %vm537, 1.0, 0.0
        %v602 = vsel %vm538, 1.0, 0.0
        %v603 = vsel %vm539, 1.0, 0.0
        %v604 = vsel %vm540, 1.0, 0.0
        %v605 = vsel %vm541, 1.0, 0.0
        %v606 = vsel %vm542, 1.0, 0.0
        %v607 = vsel %vm543, 1.0, 0.0
        %v608 = vsel %vm544, 1.0, 0.0
        %v609 = vsel %vm545, 1.0, 0.0
        %v610 = vsel %vm546, 1.0, 0.0
        %v611 = vsel %vm547, 1.0, 0.0
        %v612 = vsel %vm548, 1.0, 0.0
        %v613 = vsel %vm549, 1.0, 0.0
        %v614 = vsel %vm550, 1.0, 0.0
        %v615 = vsel %vm551, 1.0, 0.0
        %v616 = vsel %vm552, 1.0, 0.0
        %v617 = vsel %vm553, 1.0, 0.0
        %v618 = vsel %vm554, 1.0, 0.0
        %v619 = vsel %vm555, 1.0, 0.0
        %v620 = vsel %vm556, 1.0, 0.0
        %v621 = vsel %vm557, 1.0, 0.0
        %v622 = vsel %vm558, 1.0, 0.0
        %v623 = vsel %vm559, 1.0, 0.0
        %v624 = vsel %vm560, 1.0, 0.0
        %v625 = vsel %vm561, 1.0, 0.0
        %v626 = vsel %vm562, 1.0, 0.0
        %v627 = vsel %vm563, 1.0, 0.0
        %v628 = vsel %vm564, 1.0, 0.0
        %v629 = vsel %vm565, 1.0, 0.0
        %v630 = vsel %vm566, 1.0, 0.0
        %v631 = vsel %vm567, 1.0, 0.0
        %v632 = vsel %vm568, 1.0, 0.0
        %v633 = vsel %vm569, 1.0, 0.0
        %v634 = vsel %vm570, 1.0, 0.0
        %v635 = vsel %vm571, 1.0, 0.0
        %v636 = vsel %vm572, 1.0, 0.0
        %v637 = vsel %vm573, 1.0, 0.0
        %v638 = vsel %vm574, 1.0, 0.0
        %v639 = vsel %vm575, 1.0, 0.0
        %v640 = vsel %vm576, 1.0, 0.0
        %v641 = vsel %vm577, 1.0, 0.0
        %v642 = vsel %vm578, 1.0, 0.0
        %v643 = vsel %vm579, 1.0, 0.0
        %v644 = vsel %vm580, 1.0, 0.0
        %v645 = vsel %vm581, 1.0, 0.0
        %v646 = vsel %vm582, 1.0, 0.0
        %v647 = vsel %vm583, 1.0, 0.0
        %v648 = vpack.c.bf16 %v586, %v584
        %v649 = vpack.c.bf16 %v587, %v585
        %v650 = vpack.c.bf16 %v590, %v588
        %v651 = vpack.c.bf16 %v591, %v589
        %v652 = vpack.c.bf16 %v594, %v592
        %v653 = vpack.c.bf16 %v595, %v593
        %v654 = vpack.c.bf16 %v598, %v596
        %v655 = vpack.c.bf16 %v599, %v597
        %v656 = vpack.c.bf16 %v602, %v600
        %v657 = vpack.c.bf16 %v603, %v601
        %v658 = vpack.c.bf16 %v606, %v604
        %v659 = vpack.c.bf16 %v607, %v605
        %v660 = vpack.c.bf16 %v610, %v608
        %v661 = vpack.c.bf16 %v611, %v609
        %v662 = vpack.c.bf16 %v614, %v612
        %v663 = vpack.c.bf16 %v615, %v613
        %v664 = vpack.c.bf16 %v618, %v616
        %v665 = vpack.c.bf16 %v619, %v617
        %v666 = vpack.c.bf16 %v622, %v620
        %v667 = vpack.c.bf16 %v623, %v621
        %v668 = vpack.c.bf16 %v626, %v624
        %v669 = vpack.c.bf16 %v627, %v625
        %v670 = vpack.c.bf16 %v630, %v628
        %v671 = vpack.c.bf16 %v631, %v629
        %v672 = vpack.c.bf16 %v634, %v632
        %v673 = vpack.c.bf16 %v635, %v633
        %v674 = vpack.c.bf16 %v638, %v636
        %v675 = vpack.c.bf16 %v639, %v637
        %v676 = vpack.c.bf16 %v642, %v640
        %v677 = vpack.c.bf16 %v643, %v641
        %v678 = vpack.c.bf16 %v646, %v644
        %v679 = vpack.c.bf16 %v647, %v645
        %v680 = vld [vmem:[%s2] sm:$0xff]
        %v681 = vld [vmem:[%s2 + $0x8] sm:$0xff]
        %v682 = vld [vmem:[%s2 + $0x10] sm:$0xff]
        %v683 = vld [vmem:[%s2 + $0x18] sm:$0xff]
        %v684 = vld [vmem:[%s2 + $0x20] sm:$0xff]
        %v685 = vld [vmem:[%s2 + $0x28] sm:$0xff]
        %v686 = vld [vmem:[%s2 + $0x30] sm:$0xff]
        %v687 = vld [vmem:[%s2 + $0x38] sm:$0xff]
        %v696 = vunpack.c.l.b16 %v680
        %v697 = vunpack.c.h.b16 %v680
        %v698 = vunpack.c.l.b16 %v681
        %v699 = vunpack.c.h.b16 %v681
        %v700 = vunpack.c.l.b16 %v682
        %v701 = vunpack.c.h.b16 %v682
        %v702 = vunpack.c.l.b16 %v683
        %v703 = vunpack.c.h.b16 %v683
        %v704 = vunpack.c.l.b16 %v684
        %v705 = vunpack.c.h.b16 %v684
        %v706 = vunpack.c.l.b16 %v685
        %v707 = vunpack.c.h.b16 %v685
        %v708 = vunpack.c.l.b16 %v686
        %v709 = vunpack.c.h.b16 %v686
        %v710 = vunpack.c.l.b16 %v687
        %v711 = vunpack.c.h.b16 %v687
        %v712 = vpack.c.b16 %v698, %v696
        %v713 = vpack.c.b16 %v699, %v697
        %v714 = vpack.c.b16 %v702, %v700
        %v715 = vpack.c.b16 %v703, %v701
        %v716 = vpack.c.b16 %v706, %v704
        %v717 = vpack.c.b16 %v707, %v705
        %v718 = vpack.c.b16 %v710, %v708
        %v719 = vpack.c.b16 %v711, %v709
        %728 = vmatpush.bf16.msra.mxu0 %v662
        %729 = vmatpush.bf16.msra.mxu0 %v660
        %730 = vmatpush.bf16.msra.mxu0 %v658
        %731 = vmatpush.bf16.msra.mxu0 %v656
        %732 = vmatpush.bf16.msra.mxu0 %v654
        %733 = vmatpush.bf16.msra.mxu0 %v652
        %734 = vmatpush.bf16.msra.mxu0 %v650
        %735 = vmatpush.bf16.msra.mxu0 %v648
        %736 = vmatmul.bf16.gmra.mxu0 %v712
        %v737 = vpop.f32.mrf.mxu0
        %v738 = vadd.f32 0.0, %v737
        %v739 = vpop.f32.mrf.mxu0
        %v740 = vadd.f32 0.0, %v739
        %741 = vmatmul.bf16.gmra.mxu0 %v714
        %v742 = vpop.f32.mrf.mxu0
        %v743 = vadd.f32 0.0, %v742
        %v744 = vpop.f32.mrf.mxu0
        %v745 = vadd.f32 0.0, %v744
        %746 = vmatmul.bf16.gmra.mxu0 %v716
        %v747 = vpop.f32.mrf.mxu0
        %v748 = vadd.f32 0.0, %v747
        %v749 = vpop.f32.mrf.mxu0
        %v750 = vadd.f32 0.0, %v749
        %751 = vmatmul.bf16.gmra.mxu0 %v718
        %v752 = vpop.f32.mrf.mxu0
        %v753 = vadd.f32 0.0, %v752
        %v754 = vpop.f32.mrf.mxu0
        %v755 = vadd.f32 0.0, %v754
        %756 = vdwg.mxu0
        %757 = vmatpush.bf16.msra.mxu0 %v678
        %758 = vmatpush.bf16.msra.mxu0 %v676
        %759 = vmatpush.bf16.msra.mxu0 %v674
        %760 = vmatpush.bf16.msra.mxu0 %v672
        %761 = vmatpush.bf16.msra.mxu0 %v670
        %762 = vmatpush.bf16.msra.mxu0 %v668
        %763 = vmatpush.bf16.msra.mxu0 %v666
        %764 = vmatpush.bf16.msra.mxu0 %v664
        %765 = vmatmul.bf16.gmra.mxu0 %v713
        %v766 = vpop.f32.mrf.mxu0
        %v767 = vadd.f32 %v738, %v766
        %v768 = vpop.f32.mrf.mxu0
        %v769 = vadd.f32 %v740, %v768
        %770 = vmatmul.bf16.gmra.mxu0 %v715
        %v771 = vpop.f32.mrf.mxu0
        %v772 = vadd.f32 %v743, %v771
        %v773 = vpop.f32.mrf.mxu0
        %v774 = vadd.f32 %v745, %v773
        %775 = vmatmul.bf16.gmra.mxu0 %v717
        %v776 = vpop.f32.mrf.mxu0
        %v777 = vadd.f32 %v748, %v776
        %v778 = vpop.f32.mrf.mxu0
        %v779 = vadd.f32 %v750, %v778
        %780 = vmatmul.bf16.gmra.mxu0 %v719
        %v781 = vpop.f32.mrf.mxu0
        %v782 = vadd.f32 %v753, %v781
        %v783 = vpop.f32.mrf.mxu0
        %v784 = vadd.f32 %v755, %v783
        %785 = vdwg.mxu0
        %786 = vmatpush.bf16.msra.mxu0 %v663
        %787 = vmatpush.bf16.msra.mxu0 %v661
        %788 = vmatpush.bf16.msra.mxu0 %v659
        %789 = vmatpush.bf16.msra.mxu0 %v657
        %790 = vmatpush.bf16.msra.mxu0 %v655
        %791 = vmatpush.bf16.msra.mxu0 %v653
        %792 = vmatpush.bf16.msra.mxu0 %v651
        %793 = vmatpush.bf16.msra.mxu0 %v649
        %794 = vmatmul.bf16.gmra.mxu0 %v712
        %v795 = vpop.f32.mrf.mxu0
        %v796 = vadd.f32 0.0, %v795
        %v797 = vpop.f32.mrf.mxu0
        %v798 = vadd.f32 0.0, %v797
        %799 = vmatmul.bf16.gmra.mxu0 %v714
        %v800 = vpop.f32.mrf.mxu0
        %v801 = vadd.f32 0.0, %v800
        %v802 = vpop.f32.mrf.mxu0
        %v803 = vadd.f32 0.0, %v802
        %804 = vmatmul.bf16.gmra.mxu0 %v716
        %v805 = vpop.f32.mrf.mxu0
        %v806 = vadd.f32 0.0, %v805
        %v807 = vpop.f32.mrf.mxu0
        %v808 = vadd.f32 0.0, %v807
        %809 = vmatmul.bf16.gmra.mxu0 %v718
        %v810 = vpop.f32.mrf.mxu0
        %v811 = vadd.f32 0.0, %v810
        %v812 = vpop.f32.mrf.mxu0
        %v813 = vadd.f32 0.0, %v812
        %814 = vdwg.mxu0
        %815 = vmatpush.bf16.msra.mxu0 %v679
        %816 = vmatpush.bf16.msra.mxu0 %v677
        %817 = vmatpush.bf16.msra.mxu0 %v675
        %818 = vmatpush.bf16.msra.mxu0 %v673
        %819 = vmatpush.bf16.msra.mxu0 %v671
        %820 = vmatpush.bf16.msra.mxu0 %v669
        %821 = vmatpush.bf16.msra.mxu0 %v667
        %822 = vmatpush.bf16.msra.mxu0 %v665
        %823 = vmatmul.bf16.gmra.mxu0 %v713
        %v824 = vpop.f32.mrf.mxu0
        %v825 = vadd.f32 %v796, %v824
        %v826 = vpop.f32.mrf.mxu0
        %v827 = vadd.f32 %v798, %v826
        %828 = vmatmul.bf16.gmra.mxu0 %v715
        %v829 = vpop.f32.mrf.mxu0
        %v830 = vadd.f32 %v801, %v829
        %v831 = vpop.f32.mrf.mxu0
        %v832 = vadd.f32 %v803, %v831
        %833 = vmatmul.bf16.gmra.mxu0 %v717
        %v834 = vpop.f32.mrf.mxu0
        %v835 = vadd.f32 %v806, %v834
        %v836 = vpop.f32.mrf.mxu0
        %v837 = vadd.f32 %v808, %v836
        %838 = vmatmul.bf16.gmra.mxu0 %v719
        %v839 = vpop.f32.mrf.mxu0
        %v840 = vadd.f32 %v811, %v839
        %v841 = vpop.f32.mrf.mxu0
        %v842 = vadd.f32 %v813, %v841
        %843 = vdwg.mxu0
        %v844 = vpack.c.bf16 %v769, %v767
        %v845 = vpack.c.bf16 %v827, %v825
        %v846 = vpack.c.bf16 %v774, %v772
        %v847 = vpack.c.bf16 %v832, %v830
        %v848 = vpack.c.bf16 %v779, %v777
        %v849 = vpack.c.bf16 %v837, %v835
        %v850 = vpack.c.bf16 %v784, %v782
        %v851 = vpack.c.bf16 %v842, %v840
        %v852 = vld [vmem:[%s3] sm:$0xf]
        %v853 = vld [vmem:[%s3 + $0x4] sm:$0xf]
        %v854 = vld [vmem:[%s3 + $0x8] sm:$0xf]
        %v855 = vld [vmem:[%s3 + $0xc] sm:$0xf]
        %v856 = vld [vmem:[%s3 + $0x10] sm:$0xf]
        %v857 = vld [vmem:[%s3 + $0x14] sm:$0xf]
        %v858 = vld [vmem:[%s3 + $0x18] sm:$0xf]
        %v859 = vld [vmem:[%s3 + $0x1c] sm:$0xf]
        %v860 = vld [vmem:[%s3 + $0x20] sm:$0xf]
        %v861 = vld [vmem:[%s3 + $0x24] sm:$0xf]
        %v862 = vld [vmem:[%s3 + $0x28] sm:$0xf]
        %v863 = vld [vmem:[%s3 + $0x2c] sm:$0xf]
        %v864 = vld [vmem:[%s3 + $0x30] sm:$0xf]
        %v865 = vld [vmem:[%s3 + $0x34] sm:$0xf]
        %v866 = vld [vmem:[%s3 + $0x38] sm:$0xf]
        %v867 = vld [vmem:[%s3 + $0x3c] sm:$0xf]
        %v868 = vld [vmem:[%s4] sm:$0xff]
        %v869 = vld [vmem:[%s4 + $0x8] sm:$0xff]
        %v870 = vld [vmem:[%s4 + $0x10] sm:$0xff]
        %v871 = vld [vmem:[%s4 + $0x18] sm:$0xff]
        %v872 = vld [vmem:[%s4 + $0x20] sm:$0xff]
        %v873 = vld [vmem:[%s4 + $0x28] sm:$0xff]
        %v874 = vld [vmem:[%s4 + $0x30] sm:$0xff]
        %v875 = vld [vmem:[%s4 + $0x38] sm:$0xff]
        %v876 = vld [vmem:[%s4 + $0x40] sm:$0xff]
        %v877 = vld [vmem:[%s4 + $0x48] sm:$0xff]
        %v878 = vld [vmem:[%s4 + $0x50] sm:$0xff]
        %v879 = vld [vmem:[%s4 + $0x58] sm:$0xff]
        %v880 = vld [vmem:[%s4 + $0x60] sm:$0xff]
        %v881 = vld [vmem:[%s4 + $0x68] sm:$0xff]
        %v882 = vld [vmem:[%s4 + $0x70] sm:$0xff]
        %v883 = vld [vmem:[%s4 + $0x78] sm:$0xff]
        %885 = vset.pattern.permute.xlu0 0
        %886 = vperm.xlu0 %885, %v868
        %v887 = vpop.permute.xlu0 %886
        %890 = vset.pattern.permute.xlu0 0
        %891 = vperm.xlu0 %890, %v869
        %v892 = vpop.permute.xlu0 %891
        %895 = vset.pattern.permute.xlu0 0
        %896 = vperm.xlu0 %895, %v870
        %v897 = vpop.permute.xlu0 %896
        %900 = vset.pattern.permute.xlu0 0
        %901 = vperm.xlu0 %900, %v871
        %v902 = vpop.permute.xlu0 %901
        %905 = vset.pattern.permute.xlu0 0
        %906 = vperm.xlu0 %905, %v872
        %v907 = vpop.permute.xlu0 %906
        %910 = vset.pattern.permute.xlu0 0
        %911 = vperm.xlu0 %910, %v873
        %v912 = vpop.permute.xlu0 %911
        %915 = vset.pattern.permute.xlu0 0
        %916 = vperm.xlu0 %915, %v874
        %v917 = vpop.permute.xlu0 %916
        %920 = vset.pattern.permute.xlu0 0
        %921 = vperm.xlu0 %920, %v875
        %v922 = vpop.permute.xlu0 %921
        %925 = vset.pattern.permute.xlu0 0
        %926 = vperm.xlu0 %925, %v876
        %v927 = vpop.permute.xlu0 %926
        %930 = vset.pattern.permute.xlu0 0
        %931 = vperm.xlu0 %930, %v877
        %v932 = vpop.permute.xlu0 %931
        %935 = vset.pattern.permute.xlu0 0
        %936 = vperm.xlu0 %935, %v878
        %v937 = vpop.permute.xlu0 %936
        %940 = vset.pattern.permute.xlu0 0
        %941 = vperm.xlu0 %940, %v879
        %v942 = vpop.permute.xlu0 %941
        %945 = vset.pattern.permute.xlu0 0
        %946 = vperm.xlu0 %945, %v880
        %v947 = vpop.permute.xlu0 %946
        %950 = vset.pattern.permute.xlu0 0
        %951 = vperm.xlu0 %950, %v881
        %v952 = vpop.permute.xlu0 %951
        %955 = vset.pattern.permute.xlu0 0
        %956 = vperm.xlu0 %955, %v882
        %v957 = vpop.permute.xlu0 %956
        %960 = vset.pattern.permute.xlu0 0
        %961 = vperm.xlu0 %960, %v883
        %v962 = vpop.permute.xlu0 %961
        %v980 = vunpack.c.l.b16 %v852
        %v981 = vunpack.c.l.b16 %v853
        %v982 = vunpack.c.l.b16 %v854
        %v983 = vunpack.c.l.b16 %v855
        %v984 = vunpack.c.l.b16 %v856
        %v985 = vunpack.c.l.b16 %v857
        %v986 = vunpack.c.l.b16 %v858
        %v987 = vunpack.c.l.b16 %v859
        %v988 = vunpack.c.l.b16 %v860
        %v989 = vunpack.c.l.b16 %v861
        %v990 = vunpack.c.l.b16 %v862
        %v991 = vunpack.c.l.b16 %v863
        %v992 = vunpack.c.l.b16 %v864
        %v993 = vunpack.c.l.b16 %v865
        %v994 = vunpack.c.l.b16 %v866
        %v995 = vunpack.c.l.b16 %v867
        %v996 = vpack.c.b16 %v981, %v980
        %v997 = vpack.c.b16 %v983, %v982
        %v998 = vpack.c.b16 %v985, %v984
        %v999 = vpack.c.b16 %v987, %v986
        %v1000 = vpack.c.b16 %v989, %v988
        %v1001 = vpack.c.b16 %v991, %v990
        %v1002 = vpack.c.b16 %v993, %v992
        %v1003 = vpack.c.b16 %v995, %v994
        %vm1004 = vcmask 523264
        %v1006 = vsel %vm1004, %v996, 0
        %v1009 = vsel %vm1004, %v997, 0
        %v1012 = vsel %vm1004, %v998, 0
        %v1015 = vsel %vm1004, %v999, 0
        %v1018 = vsel %vm1004, %v1000, 0
        %v1021 = vsel %vm1004, %v1001, 0
        %v1024 = vsel %vm1004, %v1002, 0
        %v1027 = vsel %vm1004, %v1003, 0
        %1029 = vmatpush.bf16.msra.mxu0 0
        %1030 = vmatpush.bf16.msra.mxu0 0
        %1031 = vmatpush.bf16.msra.mxu0 0
        %1032 = vmatpush.bf16.msra.mxu0 0
        %1033 = vmatpush.bf16.msra.mxu0 %v850
        %1034 = vmatpush.bf16.msra.mxu0 %v848
        %1035 = vmatpush.bf16.msra.mxu0 %v846
        %1036 = vmatpush.bf16.msra.mxu0 %v844
        %1037 = vmatmul.bf16.gmra.mxu0 %v1006
        %v1038 = vpop.f32.mrf.mxu0
        %v1039 = vadd.f32 %v887, %v1038
        %v1040 = vpop.f32.mrf.mxu0
        %v1041 = vadd.f32 %v892, %v1040
        %1042 = vmatmul.bf16.gmra.mxu0 %v1009
        %v1043 = vpop.f32.mrf.mxu0
        %v1044 = vadd.f32 %v897, %v1043
        %v1045 = vpop.f32.mrf.mxu0
        %v1046 = vadd.f32 %v902, %v1045
        %1047 = vmatmul.bf16.gmra.mxu0 %v1012
        %v1048 = vpop.f32.mrf.mxu0
        %v1049 = vadd.f32 %v907, %v1048
        %v1050 = vpop.f32.mrf.mxu0
        %v1051 = vadd.f32 %v912, %v1050
        %1052 = vmatmul.bf16.gmra.mxu0 %v1015
        %v1053 = vpop.f32.mrf.mxu0
        %v1054 = vadd.f32 %v917, %v1053
        %v1055 = vpop.f32.mrf.mxu0
        %v1056 = vadd.f32 %v922, %v1055
        %1057 = vmatmul.bf16.gmra.mxu0 %v1018
        %v1058 = vpop.f32.mrf.mxu0
        %v1059 = vadd.f32 %v927, %v1058
        %v1060 = vpop.f32.mrf.mxu0
        %v1061 = vadd.f32 %v932, %v1060
        %1062 = vmatmul.bf16.gmra.mxu0 %v1021
        %v1063 = vpop.f32.mrf.mxu0
        %v1064 = vadd.f32 %v937, %v1063
        %v1065 = vpop.f32.mrf.mxu0
        %v1066 = vadd.f32 %v942, %v1065
        %1067 = vmatmul.bf16.gmra.mxu0 %v1024
        %v1068 = vpop.f32.mrf.mxu0
        %v1069 = vadd.f32 %v947, %v1068
        %v1070 = vpop.f32.mrf.mxu0
        %v1071 = vadd.f32 %v952, %v1070
        %1072 = vmatmul.bf16.gmra.mxu0 %v1027
        %v1073 = vpop.f32.mrf.mxu0
        %v1074 = vadd.f32 %v957, %v1073
        %v1075 = vpop.f32.mrf.mxu0
        %v1076 = vadd.f32 %v962, %v1075
        %1077 = vdwg.mxu0
        %1078 = vmatpush.bf16.msra.mxu0 0
        %1079 = vmatpush.bf16.msra.mxu0 0
        %1080 = vmatpush.bf16.msra.mxu0 0
        %1081 = vmatpush.bf16.msra.mxu0 0
        %1082 = vmatpush.bf16.msra.mxu0 %v851
        %1083 = vmatpush.bf16.msra.mxu0 %v849
        %1084 = vmatpush.bf16.msra.mxu0 %v847
        %1085 = vmatpush.bf16.msra.mxu0 %v845
        %1086 = vmatmul.bf16.gmra.mxu0 %v1006
        %v1087 = vpop.f32.mrf.mxu0
        %v1088 = vadd.f32 %v887, %v1087
        %v1089 = vpop.f32.mrf.mxu0
        %v1090 = vadd.f32 %v892, %v1089
        %1091 = vmatmul.bf16.gmra.mxu0 %v1009
        %v1092 = vpop.f32.mrf.mxu0
        %v1093 = vadd.f32 %v897, %v1092
        %v1094 = vpop.f32.mrf.mxu0
        %v1095 = vadd.f32 %v902, %v1094
        %1096 = vmatmul.bf16.gmra.mxu0 %v1012
        %v1097 = vpop.f32.mrf.mxu0
        %v1098 = vadd.f32 %v907, %v1097
        %v1099 = vpop.f32.mrf.mxu0
        %v1100 = vadd.f32 %v912, %v1099
        %1101 = vmatmul.bf16.gmra.mxu0 %v1015
        %v1102 = vpop.f32.mrf.mxu0
        %v1103 = vadd.f32 %v917, %v1102
        %v1104 = vpop.f32.mrf.mxu0
        %v1105 = vadd.f32 %v922, %v1104
        %1106 = vmatmul.bf16.gmra.mxu0 %v1018
        %v1107 = vpop.f32.mrf.mxu0
        %v1108 = vadd.f32 %v927, %v1107
        %v1109 = vpop.f32.mrf.mxu0
        %v1110 = vadd.f32 %v932, %v1109
        %1111 = vmatmul.bf16.gmra.mxu0 %v1021
        %v1112 = vpop.f32.mrf.mxu0
        %v1113 = vadd.f32 %v937, %v1112
        %v1114 = vpop.f32.mrf.mxu0
        %v1115 = vadd.f32 %v942, %v1114
        %1116 = vmatmul.bf16.gmra.mxu0 %v1024
        %v1117 = vpop.f32.mrf.mxu0
        %v1118 = vadd.f32 %v947, %v1117
        %v1119 = vpop.f32.mrf.mxu0
        %v1120 = vadd.f32 %v952, %v1119
        %1121 = vmatmul.bf16.gmra.mxu0 %v1027
        %v1122 = vpop.f32.mrf.mxu0
        %v1123 = vadd.f32 %v957, %v1122
        %v1124 = vpop.f32.mrf.mxu0
        %v1125 = vadd.f32 %v962, %v1124
        %1126 = vdwg.mxu0
        %v1127 = vmax.f32 %v1039, 0.0
        %v1128 = vmax.f32 %v1088, 0.0
        %v1129 = vmax.f32 %v1041, 0.0
        %v1130 = vmax.f32 %v1090, 0.0
        %v1131 = vmax.f32 %v1044, 0.0
        %v1132 = vmax.f32 %v1093, 0.0
        %v1133 = vmax.f32 %v1046, 0.0
        %v1134 = vmax.f32 %v1095, 0.0
        %v1135 = vmax.f32 %v1049, 0.0
        %v1136 = vmax.f32 %v1098, 0.0
        %v1137 = vmax.f32 %v1051, 0.0
        %v1138 = vmax.f32 %v1100, 0.0
        %v1139 = vmax.f32 %v1054, 0.0
        %v1140 = vmax.f32 %v1103, 0.0
        %v1141 = vmax.f32 %v1056, 0.0
        %v1142 = vmax.f32 %v1105, 0.0
        %v1143 = vmax.f32 %v1059, 0.0
        %v1144 = vmax.f32 %v1108, 0.0
        %v1145 = vmax.f32 %v1061, 0.0
        %v1146 = vmax.f32 %v1110, 0.0
        %v1147 = vmax.f32 %v1064, 0.0
        %v1148 = vmax.f32 %v1113, 0.0
        %v1149 = vmax.f32 %v1066, 0.0
        %v1150 = vmax.f32 %v1115, 0.0
        %v1151 = vmax.f32 %v1069, 0.0
        %v1152 = vmax.f32 %v1118, 0.0
        %v1153 = vmax.f32 %v1071, 0.0
        %v1154 = vmax.f32 %v1120, 0.0
        %v1155 = vmax.f32 %v1074, 0.0
        %v1156 = vmax.f32 %v1123, 0.0
        %v1157 = vmax.f32 %v1076, 0.0
        %v1158 = vmax.f32 %v1125, 0.0
        %v1159 = vpack.c.bf16 %v1129, %v1127
        %v1160 = vpack.c.bf16 %v1130, %v1128
        %v1161 = vpack.c.bf16 %v1133, %v1131
        %v1162 = vpack.c.bf16 %v1134, %v1132
        %v1163 = vpack.c.bf16 %v1137, %v1135
        %v1164 = vpack.c.bf16 %v1138, %v1136
        %v1165 = vpack.c.bf16 %v1141, %v1139
        %v1166 = vpack.c.bf16 %v1142, %v1140
        %v1167 = vpack.c.bf16 %v1145, %v1143
        %v1168 = vpack.c.bf16 %v1146, %v1144
        %v1169 = vpack.c.bf16 %v1149, %v1147
        %v1170 = vpack.c.bf16 %v1150, %v1148
        %v1171 = vpack.c.bf16 %v1153, %v1151
        %v1172 = vpack.c.bf16 %v1154, %v1152
        %v1173 = vpack.c.bf16 %v1157, %v1155
        %v1174 = vpack.c.bf16 %v1158, %v1156
        %v1175 = vld [vmem:[%s5] sm:$0xf]
        %v1176 = vld [vmem:[%s5 + $0x4] sm:$0xf]
        %v1177 = vld [vmem:[%s5 + $0x8] sm:$0xf]
        %v1178 = vld [vmem:[%s5 + $0xc] sm:$0xf]
        %v1179 = vld [vmem:[%s5 + $0x10] sm:$0xf]
        %v1180 = vld [vmem:[%s5 + $0x14] sm:$0xf]
        %v1181 = vld [vmem:[%s5 + $0x18] sm:$0xf]
        %v1182 = vld [vmem:[%s5 + $0x1c] sm:$0xf]
        %v1183 = vld [vmem:[%s6] sm:$0xff]
        %v1184 = vld [vmem:[%s6 + $0x8] sm:$0xff]
        %v1185 = vld [vmem:[%s6 + $0x10] sm:$0xff]
        %v1186 = vld [vmem:[%s6 + $0x18] sm:$0xff]
        %v1187 = vld [vmem:[%s6 + $0x20] sm:$0xff]
        %v1188 = vld [vmem:[%s6 + $0x28] sm:$0xff]
        %v1189 = vld [vmem:[%s6 + $0x30] sm:$0xff]
        %v1190 = vld [vmem:[%s6 + $0x38] sm:$0xff]
        %1192 = vset.pattern.permute.xlu0 0
        %1193 = vperm.xlu0 %1192, %v1183
        %v1194 = vpop.permute.xlu0 %1193
        %1197 = vset.pattern.permute.xlu0 0
        %1198 = vperm.xlu0 %1197, %v1184
        %v1199 = vpop.permute.xlu0 %1198
        %1202 = vset.pattern.permute.xlu0 0
        %1203 = vperm.xlu0 %1202, %v1185
        %v1204 = vpop.permute.xlu0 %1203
        %1207 = vset.pattern.permute.xlu0 0
        %1208 = vperm.xlu0 %1207, %v1186
        %v1209 = vpop.permute.xlu0 %1208
        %1212 = vset.pattern.permute.xlu0 0
        %1213 = vperm.xlu0 %1212, %v1187
        %v1214 = vpop.permute.xlu0 %1213
        %1217 = vset.pattern.permute.xlu0 0
        %1218 = vperm.xlu0 %1217, %v1188
        %v1219 = vpop.permute.xlu0 %1218
        %1222 = vset.pattern.permute.xlu0 0
        %1223 = vperm.xlu0 %1222, %v1189
        %v1224 = vpop.permute.xlu0 %1223
        %1227 = vset.pattern.permute.xlu0 0
        %1228 = vperm.xlu0 %1227, %v1190
        %v1229 = vpop.permute.xlu0 %1228
        %v1239 = vunpack.c.l.b16 %v1175
        %v1240 = vunpack.c.l.b16 %v1176
        %v1241 = vunpack.c.l.b16 %v1177
        %v1242 = vunpack.c.l.b16 %v1178
        %v1243 = vunpack.c.l.b16 %v1179
        %v1244 = vunpack.c.l.b16 %v1180
        %v1245 = vunpack.c.l.b16 %v1181
        %v1246 = vunpack.c.l.b16 %v1182
        %v1247 = vpack.c.b16 %v1240, %v1239
        %v1248 = vpack.c.b16 %v1242, %v1241
        %v1249 = vpack.c.b16 %v1244, %v1243
        %v1250 = vpack.c.b16 %v1246, %v1245
        %1255 = vmatpush.bf16.msra.mxu0 %v1173
        %1256 = vmatpush.bf16.msra.mxu0 %v1171
        %1257 = vmatpush.bf16.msra.mxu0 %v1169
        %1258 = vmatpush.bf16.msra.mxu0 %v1167
        %1259 = vmatpush.bf16.msra.mxu0 %v1165
        %1260 = vmatpush.bf16.msra.mxu0 %v1163
        %1261 = vmatpush.bf16.msra.mxu0 %v1161
        %1262 = vmatpush.bf16.msra.mxu0 %v1159
        %1263 = vmatmul.bf16.gmra.mxu0 %v1247
        %v1264 = vpop.f32.mrf.mxu0
        %v1265 = vadd.f32 %v1194, %v1264
        %v1266 = vpop.f32.mrf.mxu0
        %v1267 = vadd.f32 %v1199, %v1266
        %1268 = vmatmul.bf16.gmra.mxu0 %v1248
        %v1269 = vpop.f32.mrf.mxu0
        %v1270 = vadd.f32 %v1204, %v1269
        %v1271 = vpop.f32.mrf.mxu0
        %v1272 = vadd.f32 %v1209, %v1271
        %1273 = vmatmul.bf16.gmra.mxu0 %v1249
        %v1274 = vpop.f32.mrf.mxu0
        %v1275 = vadd.f32 %v1214, %v1274
        %v1276 = vpop.f32.mrf.mxu0
        %v1277 = vadd.f32 %v1219, %v1276
        %1278 = vmatmul.bf16.gmra.mxu0 %v1250
        %v1279 = vpop.f32.mrf.mxu0
        %v1280 = vadd.f32 %v1224, %v1279
        %v1281 = vpop.f32.mrf.mxu0
        %v1282 = vadd.f32 %v1229, %v1281
        %1283 = vdwg.mxu0
        %1284 = vmatpush.bf16.msra.mxu0 %v1174
        %1285 = vmatpush.bf16.msra.mxu0 %v1172
        %1286 = vmatpush.bf16.msra.mxu0 %v1170
        %1287 = vmatpush.bf16.msra.mxu0 %v1168
        %1288 = vmatpush.bf16.msra.mxu0 %v1166
        %1289 = vmatpush.bf16.msra.mxu0 %v1164
        %1290 = vmatpush.bf16.msra.mxu0 %v1162
        %1291 = vmatpush.bf16.msra.mxu0 %v1160
        %1292 = vmatmul.bf16.gmra.mxu0 %v1247
        %v1293 = vpop.f32.mrf.mxu0
        %v1294 = vadd.f32 %v1194, %v1293
        %v1295 = vpop.f32.mrf.mxu0
        %v1296 = vadd.f32 %v1199, %v1295
        %1297 = vmatmul.bf16.gmra.mxu0 %v1248
        %v1298 = vpop.f32.mrf.mxu0
        %v1299 = vadd.f32 %v1204, %v1298
        %v1300 = vpop.f32.mrf.mxu0
        %v1301 = vadd.f32 %v1209, %v1300
        %1302 = vmatmul.bf16.gmra.mxu0 %v1249
        %v1303 = vpop.f32.mrf.mxu0
        %v1304 = vadd.f32 %v1214, %v1303
        %v1305 = vpop.f32.mrf.mxu0
        %v1306 = vadd.f32 %v1219, %v1305
        %1307 = vmatmul.bf16.gmra.mxu0 %v1250
        %v1308 = vpop.f32.mrf.mxu0
        %v1309 = vadd.f32 %v1224, %v1308
        %v1310 = vpop.f32.mrf.mxu0
        %v1311 = vadd.f32 %v1229, %v1310
        %1312 = vdwg.mxu0
        %v1313 = vmax.f32 %v1265, 0.0
        %v1314 = vmax.f32 %v1294, 0.0
        %v1315 = vmax.f32 %v1267, 0.0
        %v1316 = vmax.f32 %v1296, 0.0
        %v1317 = vmax.f32 %v1270, 0.0
        %v1318 = vmax.f32 %v1299, 0.0
        %v1319 = vmax.f32 %v1272, 0.0
        %v1320 = vmax.f32 %v1301, 0.0
        %v1321 = vmax.f32 %v1275, 0.0
        %v1322 = vmax.f32 %v1304, 0.0
        %v1323 = vmax.f32 %v1277, 0.0
        %v1324 = vmax.f32 %v1306, 0.0
        %v1325 = vmax.f32 %v1280, 0.0
        %v1326 = vmax.f32 %v1309, 0.0
        %v1327 = vmax.f32 %v1282, 0.0
        %v1328 = vmax.f32 %v1311, 0.0
        %v1329 = vld [vmem:[%s7] sm:$0xff]
        %v1330 = vld [vmem:[%s7 + $0x8] sm:$0xff]
        %v1331 = vld [vmem:[%s7 + $0x10] sm:$0xff]
        %v1332 = vld [vmem:[%s7 + $0x18] sm:$0xff]
        %v1333 = vld [vmem:[%s7 + $0x20] sm:$0xff]
        %v1334 = vld [vmem:[%s7 + $0x28] sm:$0xff]
        %v1335 = vld [vmem:[%s7 + $0x30] sm:$0xff]
        %v1336 = vld [vmem:[%s7 + $0x38] sm:$0xff]
        %1338 = vset.pattern.permute.xlu0 0
        %1339 = vperm.xlu0 %1338, %v1329
        %v1340 = vpop.permute.xlu0 %1339
        %1343 = vset.pattern.permute.xlu0 0
        %1344 = vperm.xlu0 %1343, %v1330
        %v1345 = vpop.permute.xlu0 %1344
        %1348 = vset.pattern.permute.xlu0 0
        %1349 = vperm.xlu0 %1348, %v1331
        %v1350 = vpop.permute.xlu0 %1349
        %1353 = vset.pattern.permute.xlu0 0
        %1354 = vperm.xlu0 %1353, %v1332
        %v1355 = vpop.permute.xlu0 %1354
        %1358 = vset.pattern.permute.xlu0 0
        %1359 = vperm.xlu0 %1358, %v1333
        %v1360 = vpop.permute.xlu0 %1359
        %1363 = vset.pattern.permute.xlu0 0
        %1364 = vperm.xlu0 %1363, %v1334
        %v1365 = vpop.permute.xlu0 %1364
        %1368 = vset.pattern.permute.xlu0 0
        %1369 = vperm.xlu0 %1368, %v1335
        %v1370 = vpop.permute.xlu0 %1369
        %1373 = vset.pattern.permute.xlu0 0
        %1374 = vperm.xlu0 %1373, %v1336
        %v1375 = vpop.permute.xlu0 %1374
        %v1377 = vmul.f32 %v1313, %v1340
        %v1378 = vmul.f32 %v1314, %v1340
        %v1379 = vmul.f32 %v1315, %v1345
        %v1380 = vmul.f32 %v1316, %v1345
        %v1381 = vmul.f32 %v1317, %v1350
        %v1382 = vmul.f32 %v1318, %v1350
        %v1383 = vmul.f32 %v1319, %v1355
        %v1384 = vmul.f32 %v1320, %v1355
        %v1385 = vmul.f32 %v1321, %v1360
        %v1386 = vmul.f32 %v1322, %v1360
        %v1387 = vmul.f32 %v1323, %v1365
        %v1388 = vmul.f32 %v1324, %v1365
        %v1389 = vmul.f32 %v1325, %v1370
        %v1390 = vmul.f32 %v1326, %v1370
        %v1391 = vmul.f32 %v1327, %v1375
        %v1392 = vmul.f32 %v1328, %v1375
        %v1393 = vadd.f32 %v1377, %v1379
        %v1394 = vadd.f32 %v1393, %v1381
        %v1395 = vadd.f32 %v1394, %v1383
        %v1396 = vadd.f32 %v1395, %v1385
        %v1397 = vadd.f32 %v1396, %v1387
        %v1398 = vadd.f32 %v1397, %v1389
        %v1399 = vadd.f32 %v1398, %v1391
        %v1400 = vrot.slane %v1399, 4
        %v1401 = vadd.f32 %v1399, %v1400
        %v1402 = vrot.slane %v1401, 2
        %v1403 = vadd.f32 %v1401, %v1402
        %v1404 = vrot.slane %v1403, 1
        %v1405 = vadd.f32 %v1403, %v1404
        %v1406 = vadd.f32 %v1378, %v1380
        %v1407 = vadd.f32 %v1406, %v1382
        %v1408 = vadd.f32 %v1407, %v1384
        %v1409 = vadd.f32 %v1408, %v1386
        %v1410 = vadd.f32 %v1409, %v1388
        %v1411 = vadd.f32 %v1410, %v1390
        %v1412 = vadd.f32 %v1411, %v1392
        %v1413 = vrot.slane %v1412, 4
        %v1414 = vadd.f32 %v1412, %v1413
        %v1415 = vrot.slane %v1414, 2
        %v1416 = vadd.f32 %v1414, %v1415
        %v1417 = vrot.slane %v1416, 1
        %v1418 = vadd.f32 %v1416, %v1417
        %v1419 = vld [vmem:[#allocation2] sm:$0x1]
        %1421 = vset.pattern.permute.xlu0 0
        %1422 = vperm.xlu0 %1421, %v1419
        %v1423 = vpop.permute.xlu0 %1422
        %v1425 = vperm.slane %v1423, 0
        %v1426 = vadd.f32 %v1405, %v1425
        %v1427 = vadd.f32 %v1418, %v1425
        %v1428 = vxor.u32 %v1426, 2147483648
        %v1429 = vxor.u32 %v1427, 2147483648
        %v1430 = vmul.f32 %v1428, 1.442695
        %v1431 = vpow.pop %v1430
        %v1432 = vmul.f32 %v1429, 1.442695
        %v1433 = vpow.pop %v1432
        %v1434 = vadd.f32 %v1431, 1.0
        %v1435 = vadd.f32 %v1433, 1.0
        %v1436 = vrcp.pop %v1434
        %v1437 = vmul.f32 %v1434, %v1436
        %v1438 = vsub.f32 1.0, %v1437
        %v1439 = vmul.f32 %v1436, %v1438
        %v1440 = vadd.f32 %v1436, %v1439
        %vm1441 = vweird.f32 %v1434
        %vm1442 = vweird.f32 %v1436
        %vm1443 = vmor %vm1441, %vm1442
        %v1444 = vsel %vm1443, %v1436, %v1440
        %v1445 = vand.u32 2147483647, %v1434
        %vm1446 = vcmp.eq.f32.partialorder %v1445, 8.507059e+37
        %v1447 = vand.u32 %v1434, 2147483648
        %v1448 = vor.u32 1.1754944e-38, %v1447
        %v1449 = vsel %vm1446, %v1448, %v1444
        %v1450 = vmul.f32 1.0, %v1449
        %v1451 = vrcp.pop %v1435
        %v1452 = vmul.f32 %v1435, %v1451
        %v1453 = vsub.f32 1.0, %v1452
        %v1454 = vmul.f32 %v1451, %v1453
        %v1455 = vadd.f32 %v1451, %v1454
        %vm1456 = vweird.f32 %v1435
        %vm1457 = vweird.f32 %v1451
        %vm1458 = vmor %vm1456, %vm1457
        %v1459 = vsel %vm1458, %v1451, %v1455
        %v1460 = vand.u32 2147483647, %v1435
        %vm1461 = vcmp.eq.f32.partialorder %v1460, 8.507059e+37
        %v1462 = vand.u32 %v1435, 2147483648
        %v1463 = vor.u32 1.1754944e-38, %v1462
        %v1464 = vsel %vm1461, %v1463, %v1459
        %v1465 = vmul.f32 1.0, %v1464
        %v1466 = vmul.f32 %v1450, 4.0
        %v1467 = vmul.f32 %v1465, 4.0
        %v1468 = vadd.f32 %v1466, 1.0
        %v1469 = vadd.f32 %v1467, 1.0
        %v1472 = vrot.slane %v1469, 7
        %vm1473 = vcmask 1040384
        %v1474 = vsel %vm1473, %v1468, %v1472
        %v1476 = vlaneseq
        %vm1477 = vcmp.ge.s32.totalorder %v1476, 0
        %vm1478 = vcmp.lt.s32.totalorder %v1476, 256
        %vm1479 = vmand %vm1477, %vm1478
        %1480 = vst.msk [vmem:[%s340] sm:$0x3] %vm1479, %v1474
        %s1481 = sand.u32 %s232, 1
        %s1482 = scalar_lea.sflag [#allocation4], %s1481
        %s1483 = sand.u32 %s232, 1
        %s1484 = smul.addr %s1483, 2
        %s1485 = scalar_lea.vmem [#allocation3], %s1484
        // Predicated region
        $region57: #{tpu_custom_call.1} parent=55 // pred_check
          %p1486 = pneg %p242
        $region58: #{tpu_custom_call.1} parent=55 // pred_check_branch
          %1488 = sbr.rel (%p1486) target = $region60
        $region59: #{tpu_custom_call.1} parent=55 // pred_region
          %s1489 = smul.u32 2, %s25
          %1491 = vsyncadd %s1482, 0
          %s1492 = scalar_lea.hbm %s9, %s1489
          %s1494 = sshll.u32 %s1485, 4
          %s1495 = int_to_ptr.vmem [resolvable:$true] %s1494
          %s1496 = sshll.u32 %s1492, 4
          %s1497 = int_to_ptr.hbm [resolvable:$true] %s1496
          %1499 = dma.vmem_to_hbm [thread:$0]  %s1495, 32, %s1497, %s1482
        $region60: #{tpu_custom_call.1} parent=55 // pred_fallthru
          _
      $region56: #{tpu_custom_call.1} parent=5 // pred_fallthru
        _
      %p1500 = scmp.le.s32.totalorder 2, %s20
      // Predicated region
      $region61: #{tpu_custom_call.1} parent=5 // pred_check
        %p1501 = pneg %p1500
      $region62: #{tpu_custom_call.1} parent=5 // pred_check_branch
        %1503 = sbr.rel (%p1501) target = $region64
      $region63: #{tpu_custom_call.1} parent=5 // pred_region
        %s1504 = ssub.s32 %s20, 2
        // Predicated region
        $region65: #{tpu_custom_call.1} parent=63 // pred_check
          %p1505 = pneg %p248
        $region66: #{tpu_custom_call.1} parent=63 // pred_check_branch
          %1507 = sbr.rel (%p1505) target = $region68
        $region67: #{tpu_custom_call.1} parent=63 // pred_region
          %s1508 = sand.u32 %s233, 1
          %s1509 = scalar_lea.sflag [#allocation4], %s1508
          %s1510 = sand.u32 %s233, 1
          %s1511 = smul.addr %s1510, 2
          %s1512 = scalar_lea.vmem [#allocation3], %s1511
          %1514 = dma.done %s1509, 32
        $region68: #{tpu_custom_call.1} parent=63 // pred_fallthru
          _
      $region64: #{tpu_custom_call.1} parent=5 // pred_fallthru
        _
    $region6: #{tpu_custom_call.1} parent=1 // loop_footer
      %s24 = sadd.s32 1, %s20
    $region7: #{tpu_custom_call.1} parent=1 // loop_footer_branch
      %19 = sbr.rel target = $region3
    $region8: #{tpu_custom_call.1} parent=1 // loop_exit
      _
    %1515 = vsyncpa [#allocation4], 1
    %s1516 = scalar_lea.sflag [#allocation4], 1
    %1517 = vsyncpa %s1516, 1

</llo_original>
